<compile_context>
chip_gen: v6e
topology: v6e:2x2x1
jax: 0.10.0
libtpu: 0.0.40
codegen_flags: <defaults>
</compile_context>

<pallas_src>
import jax
import jax.numpy as jnp
from jax.experimental import pallas as pl
from jax.experimental.pallas import tpu as pltpu

# ----------------------------- configuration --------------------------------
LATENT_SIZE = 256          # implied by filter in_channels = 256 + 256 + 3 = 515
PRE_LATENT_CHANNELS = 128  # hidden width of the MVN MLP heads
ENC_CHANNELS = 256         # channels_sa_features of the final SA block
NUM_CLASSES = 4
LEAKY_SLOPE = 0.01         # F.leaky_relu default


# ------------------------------ init helpers --------------------------------
def _dense_init(key, din, dout, fan_in=None):
    """Row-major (Din, Dout) weight + (1, Dout) bias for (B, Din) @ W layers."""
    kw, kb = jax.random.split(key)
    fan = float(din if fan_in is None else fan_in)
    w = jax.random.normal(kw, (din, dout), jnp.float32) / jnp.sqrt(fan)
    b = 0.01 * jax.random.normal(kb, (1, dout), jnp.float32)
    return w, b


def _conv_init(key, cin, cout, fan_in=None):
    """(C_out, C_in) weight + (C_out, 1) bias for channels-first pointwise conv."""
    kw, kb = jax.random.split(key)
    fan = float(cin if fan_in is None else fan_in)
    w = jax.random.normal(kw, (cout, cin), jnp.float32) / jnp.sqrt(fan)
    b = 0.01 * jax.random.normal(kb, (cout, 1), jnp.float32)
    return w, b


def init_params(key):
    keys = jax.random.split(key, 24)
    p = {}
    # --- encoder: pointwise conv 6 -> 64 -> 256 (channels-first weights) ----
    p["enc_w1"], p["enc_b1"] = _conv_init(keys[0], 6, 64)
    p["enc_w2"], p["enc_b2"] = _conv_init(keys[1], 64, ENC_CHANNELS)

    # --- First_Latent head: in = 256 -----------------------------------------
    first = {}
    first["w1"], first["b1"] = _dense_init(keys[2], ENC_CHANNELS, PRE_LATENT_CHANNELS)
    first["w2"], first["b2"] = _dense_init(keys[3], PRE_LATENT_CHANNELS, PRE_LATENT_CHANNELS)
    first["w3"], first["b3"] = _dense_init(keys[4], PRE_LATENT_CHANNELS, 2 * LATENT_SIZE)
    p["first"] = first

    # --- Filter head: in = 256 + 256 + 3 = 515, first layer split (aligned) --
    filt = {}
    fan = LATENT_SIZE + ENC_CHANNELS + 3
    filt["w1_lat"], filt["b1"] = _dense_init(keys[5], LATENT_SIZE, PRE_LATENT_CHANNELS, fan_in=fan)
    filt["w1_enc"], _ = _dense_init(keys[6], ENC_CHANNELS, PRE_LATENT_CHANNELS, fan_in=fan)
    filt["w1_act"], _ = _dense_init(keys[7], 3, PRE_LATENT_CHANNELS, fan_in=fan)
    filt["w2"], filt["b2"] = _dense_init(keys[8], PRE_LATENT_CHANNELS, PRE_LATENT_CHANNELS)
    filt["w3"], filt["b3"] = _dense_init(keys[9], PRE_LATENT_CHANNELS, 2 * LATENT_SIZE)
    p["filter"] = filt

    # --- Dynamic head: in = 256 + 3 = 259, first layer split ------------------
    dyn = {}
    fan = LATENT_SIZE + 3
    dyn["w1_lat"], dyn["b1"] = _dense_init(keys[10], LATENT_SIZE, PRE_LATENT_CHANNELS, fan_in=fan)
    dyn["w1_act"], _ = _dense_init(keys[11], 3, PRE_LATENT_CHANNELS, fan_in=fan)
    dyn["w2"], dyn["b2"] = _dense_init(keys[12], PRE_LATENT_CHANNELS, PRE_LATENT_CHANNELS)
    dyn["w3"], dyn["b3"] = _dense_init(keys[13], PRE_LATENT_CHANNELS, 2 * LATENT_SIZE)
    p["dynamic"] = dyn

    # --- decoder heads (channels-first weights, first layer split lat / xyz) --
    dec_in = LATENT_SIZE + 3
    p["cls_w1x"], p["cls_b1"] = _conv_init(keys[14], 3, 64, fan_in=dec_in)
    p["cls_w1l"], _ = _conv_init(keys[15], LATENT_SIZE, 64, fan_in=dec_in)
    p["cls_w2"], p["cls_b2"] = _conv_init(keys[16], 64, NUM_CLASSES)
    p["rec_w1x"], p["rec_b1"] = _conv_init(keys[17], 3, 64, fan_in=dec_in)
    p["rec_w1l"], _ = _conv_init(keys[18], LATENT_SIZE, 64, fan_in=dec_in)
    p["rec_w2"], p["rec_b2"] = _conv_init(keys[19], 64, 32)
    p["rec_w3"], p["rec_b3"] = _conv_init(keys[20], 32, 3)
    return p


# ------------------------------ small utilities ------------------------------
def _leaky_relu(x):
    return jnp.where(x > 0, x, LEAKY_SLOPE * x)


def _softplus(x):
    return jnp.maximum(x, 0.0) + jnp.log(1.0 + jnp.exp(-jnp.abs(x)))


def _dot(a, b):
    return jnp.dot(a, b, preferred_element_type=jnp.float32)


def _full_spec(arr):
    """Full-array block, constant index -> stays resident in VMEM across the grid."""
    nd = arr.ndim
    return pl.BlockSpec(arr.shape, lambda *_ , _nd=nd: (0,) * _nd)


def _frames_per_block(bt):
    """Batch several frames per grid step to amortize the ~0.35us step overhead."""
    for f in (8, 4, 2, 1):
        if bt % f == 0:
            return f
    return 1


# ------------------------------ Pallas kernels -------------------------------
def encoder_kernel(pts_ref, w1_ref, b1_ref, w2_ref, b2_ref, out_ref):
    """Channels-first pointwise MLP 6->64->256 + per-frame global max-pool.

    pts block: (F, 6, N) ; out block: (F, 256, 1).  Lane dim = N (dense).
    """
    frames = pts_ref.shape[0]
    w1, b1 = w1_ref[...], b1_ref[...]
    w2, b2 = w2_ref[...], b2_ref[...]
    for f in range(frames):                       # small static unroll over frames
        x = pts_ref[f]                            # (6, N)
        h = jnp.maximum(_dot(w1, x) + b1, 0.0)    # (64, N)
        h = jnp.maximum(_dot(w2, h) + b2, 0.0)    # (256, N)
        out_ref[f] = jnp.max(h, axis=1, keepdims=True)   # (256, 1)


def encoder_forward(params, pts):
    """pts: (BT, 6, N) channels-first -> features (BT, 256)."""
    BT, C, N = pts.shape
    F = _frames_per_block(BT)
    out = pl.pallas_call(
        encoder_kernel,
        grid=(BT // F,),
        in_specs=[
            pl.BlockSpec((F, C, N), lambda i: (i, 0, 0)),
            _full_spec(params["enc_w1"]), _full_spec(params["enc_b1"]),
            _full_spec(params["enc_w2"]), _full_spec(params["enc_b2"]),
        ],
        out_specs=pl.BlockSpec((F, ENC_CHANNELS, 1), lambda i: (i, 0, 0)),
        out_shape=jax.ShapeDtypeStruct((BT, ENC_CHANNELS, 1), jnp.float32),
        compiler_params=pltpu.CompilerParams(dimension_semantics=("parallel",)),
    )(pts, params["enc_w1"], params["enc_b1"], params["enc_w2"], params["enc_b2"])
    return out[..., 0]                            # (BT, 256)


def latent_chain_kernel(enc_ref, act_ref, epsf_ref, epsd_ref,
                        fw1, fb1, fw2, fb2, fw3, fb3,
                        pw1l, pw1e, pw1a, pb1, pw2, pb2, pw3, pb3,
                        dw1l, dw1a, db1, dw2, db2, dw3, db3,
                        locf_ref, varf_ref, locd_ref, vard_ref, samp_ref,
                        lat_s, dyn_s):
    """Fused latent state-space recurrence over the whole sequence (grid=(T,)).

    Step 0 runs the First_Latent head; steps t>0 run the Filter and Dynamic
    heads.  Carried samples live in VMEM scratch, weights stay resident.
    """
    t = pl.program_id(0)
    enc = enc_ref[0]                              # (B, 256)
    act = act_ref[0]                              # (B, 3)
    eps_f = epsf_ref[0]                           # (B, 256)
    eps_d = epsd_ref[0]                           # (B, 256)
    L = LATENT_SIZE

    def head(h, w3_ref, b3_ref, eps):
        out = _dot(h, w3_ref[...]) + b3_ref[...]  # (B, 512)
        loc = out[:, :L]
        var = _softplus(out[:, L:])               # diag variance (see TODO above)
        return loc, var, loc + jnp.sqrt(var) * eps

    @pl.when(t == 0)
    def _():
        h = _leaky_relu(_dot(enc, fw1[...]) + fb1[...])
        h = _leaky_relu(_dot(h, fw2[...]) + fb2[...])
        loc, var, samp = head(h, fw3, fb3, eps_f)
        locf_ref[0] = loc
        varf_ref[0] = var
        locd_ref[0] = jnp.zeros_like(loc)         # unused slot, keep deterministic
        vard_ref[0] = jnp.zeros_like(var)
        samp_ref[0] = samp
        lat_s[...] = samp
        dyn_s[...] = samp

    @pl.when(t > 0)
    def _():
        t_lat = lat_s[...]
        t_dyn = dyn_s[...]
        # filter head on [t_lat(256), enc(256), act(3)] via lane-aligned split dots
        h = _leaky_relu(_dot(t_lat, pw1l[...]) + _dot(enc, pw1e[...])
                        + _dot(act, pw1a[...]) + pb1[...])
        h = _leaky_relu(_dot(h, pw2[...]) + pb2[...])
        f_loc, f_var, f_samp = head(h, pw3, pb3, eps_f)
        # dynamic head on [t_dyn(256), act(3)]
        hd = _leaky_relu(_dot(t_dyn, dw1l[...]) + _dot(act, dw1a[...]) + db1[...])
        hd = _leaky_relu(_dot(hd, dw2[...]) + db2[...])
        d_loc, d_var, d_samp = head(hd, dw3, db3, eps_d)
        locf_ref[0] = f_loc
        varf_ref[0] = f_var
        locd_ref[0] = d_loc
        vard_ref[0] = d_var
        samp_ref[0] = f_samp
        lat_s[...] = f_samp
        dyn_s[...] = d_samp


def latent_chain_forward(params, encoding, actions, eps_f, eps_d):
    """encoding/actions/eps: (T, B, .) -> 5 stacked (T, B, 256) outputs."""
    T, B, _ = encoding.shape
    pf, pp, pd = params["first"], params["filter"], params["dynamic"]
    step3 = lambda a: pl.BlockSpec((1,) + a.shape[1:], lambda t: (t, 0, 0))
    out_spec = pl.BlockSpec((1, B, LATENT_SIZE), lambda t: (t, 0, 0))
    out_shp = jax.ShapeDtypeStruct((T, B, LATENT_SIZE), jnp.float32)

    weights = (pf["w1"], pf["b1"], pf["w2"], pf["b2"], pf["w3"], pf["b3"],
               pp["w1_lat"], pp["w1_enc"], pp["w1_act"], pp["b1"],
               pp["w2"], pp["b2"], pp["w3"], pp["b3"],
               pd["w1_lat"], pd["w1_act"], pd["b1"],
               pd["w2"], pd["b2"], pd["w3"], pd["b3"])

    return pl.pallas_call(
        latent_chain_kernel,
        grid_spec=pltpu.PrefetchScalarGridSpec(
            num_scalar_prefetch=0,
            grid=(T,),
            in_specs=[step3(encoding), step3(actions), step3(eps_f), step3(eps_d)]
                     + [_full_spec(w) for w in weights],
            out_specs=(out_spec, out_spec, out_spec, out_spec, out_spec),
            scratch_shapes=[pltpu.VMEM((B, LATENT_SIZE), jnp.float32),
                            pltpu.VMEM((B, LATENT_SIZE), jnp.float32)],
        ),
        out_shape=(out_shp, out_shp, out_shp, out_shp, out_shp),
        compiler_params=pltpu.CompilerParams(dimension_semantics=("arbitrary",)),
    )(encoding, actions, eps_f, eps_d, *weights)


def decoder_kernel(pts_ref, lat_ref,
                   wc1x, wc1l, bc1, wc2, bc2,
                   wr1x, wr1l, br1, wr2, br2, wr3, br3,
                   seg_ref, rec_ref):
    """Channels-first pointwise heads; latent projection computed once / frame.

    pts block: (F, 6, N), lat block: (F, 256, 1),
    seg block: (F, num_classes, N), rec block: (F, 3, N).
    """
    frames = pts_ref.shape[0]
    for f in range(frames):
        pts = pts_ref[f]                          # (6, N)
        coords = pts[:3, :]                       # (3, N) - sliced in-kernel, no HBM pass
        lat = lat_ref[f]                          # (256, 1)
        # per-frame latent projections (NOT recomputed per point)
        pc = _dot(wc1l[...], lat)                 # (64, 1)
        pr = _dot(wr1l[...], lat)                 # (64, 1)
        # segmentation head: [lat, xyz] -> 64 -> num_classes
        hs = jnp.maximum(_dot(wc1x[...], coords) + pc + bc1[...], 0.0)   # (64, N)
        seg = _dot(wc2[...], hs) + bc2[...]                              # (4, N)
        # reconstruction head: [lat, xyz] -> 64 -> 32 -> 3
        hr = jnp.maximum(_dot(wr1x[...], coords) + pr + br1[...], 0.0)   # (64, N)
        hr = jnp.maximum(_dot(wr2[...], hr) + br2[...], 0.0)             # (32, N)
        rec = _dot(wr3[...], hr) + br3[...]                              # (3, N)
        seg_ref[f] = seg
        rec_ref[f] = rec


def decoder_forward(params, pts, lat_cols):
    """pts: (BT, 6, N); lat_cols: (BT, 256, 1) -> seg (BT, C, N), rec (BT, 3, N)."""
    BT, C, N = pts.shape
    F = _frames_per_block(BT)
    seg, rec = pl.pallas_call(
        decoder_kernel,
        grid=(BT // F,),
        in_specs=[
            pl.BlockSpec((F, C, N), lambda i: (i, 0, 0)),
            pl.BlockSpec((F, LATENT_SIZE, 1), lambda i: (i, 0, 0)),
            _full_spec(params["cls_w1x"]), _full_spec(params["cls_w1l"]),
            _full_spec(params["cls_b1"]),
            _full_spec(params["cls_w2"]), _full_spec(params["cls_b2"]),
            _full_spec(params["rec_w1x"]), _full_spec(params["rec_w1l"]),
            _full_spec(params["rec_b1"]),
            _full_spec(params["rec_w2"]), _full_spec(params["rec_b2"]),
            _full_spec(params["rec_w3"]), _full_spec(params["rec_b3"]),
        ],
        out_specs=(
            pl.BlockSpec((F, NUM_CLASSES, N), lambda i: (i, 0, 0)),
            pl.BlockSpec((F, 3, N), lambda i: (i, 0, 0)),
        ),
        out_shape=(
            jax.ShapeDtypeStruct((BT, NUM_CLASSES, N), jnp.float32),
            jax.ShapeDtypeStruct((BT, 3, N), jnp.float32),
        ),
        compiler_params=pltpu.CompilerParams(dimension_semantics=("parallel",)),
    )(pts, lat_cols,
      params["cls_w1x"], params["cls_w1l"], params["cls_b1"],
      params["cls_w2"], params["cls_b2"],
      params["rec_w1x"], params["rec_w1l"], params["rec_b1"],
      params["rec_w2"], params["rec_b2"], params["rec_w3"], params["rec_b3"])
    return seg, rec


# ------------------------------- model forward -------------------------------
def model_forward(params, points, camera_poses, noise_key):
    """
    points:       (B, T, 6, N)   (PyTorch NCW per frame, kept channels-first)
    camera_poses: (B, T, 3)
    """
    B, T, C, N = points.shape
    BT = B * T

    pts = points.reshape(BT, C, N)                          # no transpose, lane dim = N

    # ---- encoder -------------------------------------------------------------
    features = encoder_forward(params, pts)                 # (BT, 256)
    encoding = jnp.transpose(features.reshape(B, T, ENC_CHANNELS), (1, 0, 2))   # (T, B, 256)
    cam = jnp.transpose(camera_poses, (1, 0, 2))             # (T, B, 3)
    actions = jnp.concatenate(
        [jnp.zeros((1, B, 3), jnp.float32), cam[1:] - cam[:-1]], axis=0)        # (T, B, 3)

    # ---- latent state-space model (single fused kernel over the sequence) ----
    kf, kd = jax.random.split(noise_key)
    eps_f = jax.random.normal(kf, (T, B, LATENT_SIZE), jnp.float32)
    eps_d = jax.random.normal(kd, (T, B, LATENT_SIZE), jnp.float32)
    loc_f, var_f, loc_d, var_d, samples = latent_chain_forward(
        params, encoding, actions, eps_f, eps_d)

    first_latent_rep_dist = (loc_f[0], var_f[0])
    filter_latent_dists = [(loc_f[t], var_f[t]) for t in range(1, T)]
    dynamic_latent_dists = [(loc_d[t], var_d[t]) for t in range(1, T)]

    # filter samples, frame-major (b*T + t), as per-frame (256, 1) columns
    latents = jnp.transpose(samples, (1, 0, 2)).reshape(BT, LATENT_SIZE)
    lat_cols = latents[:, :, None]                           # (BT, 256, 1)

    # ---- decoder (channels-first outputs, no wrapper transposes) -------------
    seg, rec = decoder_forward(params, pts, lat_cols)

    return {
        "segmentation": seg,                                 # (BT, num_classes, N)
        "reconstruction": rec,                               # (BT, 3, N)
        "filter_latent_dists": filter_latent_dists,          # list of (loc, var)
        "dynamic_latent_dists": dynamic_latent_dists,
        "first_latent_rep_dist": first_latent_rep_dist,
    }


# ----------------------------------- main ------------------------------------
if __name__ == "__main__":
    B, T, N = 2, 3, 128
    key = jax.random.PRNGKey(0)
    k_pts, k_cam, k_par, k_eps = jax.random.split(key, 4)

    points = jax.random.normal(k_pts, (B, T, 6, N), jnp.float32)
    camera_poses = jax.random.normal(k_cam, (B, T, 3), jnp.float32)
    params = init_params(k_par)

    out = model_forward(params, points, camera_poses, k_eps)
    jax.block_until_ready(out)

    assert out["segmentation"].shape == (B * T, NUM_CLASSES, N)
    assert out["reconstruction"].shape == (B * T, 3, N)
    assert out["first_latent_rep_dist"][0].shape == (B, LATENT_SIZE)
    assert len(out["filter_latent_dists"]) == T - 1
    assert len(out["dynamic_latent_dists"]) == T - 1
    print("KERNEL_OK")
</pallas_src>

<mosaic_0001>
module attributes {stable_mosaic.version = 11 : i64} {
  func.func @encoder_kernel(%arg0: i32, %arg1: memref<2x6x128xf32, #tpu.memory_space<vmem>>, %arg2: memref<64x6xf32, #tpu.memory_space<vmem>>, %arg3: memref<64x1xf32, #tpu.memory_space<vmem>>, %arg4: memref<256x64xf32, #tpu.memory_space<vmem>>, %arg5: memref<256x1xf32, #tpu.memory_space<vmem>>, %arg6: memref<2x256x1xf32, #tpu.memory_space<vmem>>) attributes {dimension_semantics = [#tpu.dimension_semantics<parallel>], iteration_bounds = array<i64: 3>, scalar_prefetch = 0 : i64, scratch_operands = 0 : i64, tpu.core_type = #tpu.core_type<tc>, window_params = [{transform_indices = @transform_0, window_bounds = array<i64: 2, 6, 128>}, {pipeline_mode = #tpu.pipeline_mode<synchronous>, transform_indices = @transform_1, window_bounds = array<i64: 64, 6>}, {pipeline_mode = #tpu.pipeline_mode<synchronous>, transform_indices = @transform_2, window_bounds = array<i64: 64, 1>}, {pipeline_mode = #tpu.pipeline_mode<synchronous>, transform_indices = @transform_3, window_bounds = array<i64: 256, 64>}, {pipeline_mode = #tpu.pipeline_mode<synchronous>, transform_indices = @transform_4, window_bounds = array<i64: 256, 1>}, {transform_indices = @transform_5, window_bounds = array<i64: 2, 256, 1>}]} {
    %c0 = arith.constant 0 : index
    %c0_0 = arith.constant 0 : index
    %0 = vector.load %arg2[%c0, %c0_0] : memref<64x6xf32, #tpu.memory_space<vmem>>, vector<64x6xf32>
    %c0_1 = arith.constant 0 : index
    %c0_2 = arith.constant 0 : index
    %1 = vector.load %arg3[%c0_1, %c0_2] : memref<64x1xf32, #tpu.memory_space<vmem>>, vector<64x1xf32>
    %c0_3 = arith.constant 0 : index
    %c0_4 = arith.constant 0 : index
    %2 = vector.load %arg4[%c0_3, %c0_4] : memref<256x64xf32, #tpu.memory_space<vmem>>, vector<256x64xf32>
    %c0_5 = arith.constant 0 : index
    %c0_6 = arith.constant 0 : index
    %3 = vector.load %arg5[%c0_5, %c0_6] : memref<256x1xf32, #tpu.memory_space<vmem>>, vector<256x1xf32>
    %c0_7 = arith.constant 0 : index
    %c0_8 = arith.constant 0 : index
    %c0_9 = arith.constant 0 : index
    %4 = vector.load %arg1[%c0_7, %c0_8, %c0_9] : memref<2x6x128xf32, #tpu.memory_space<vmem>>, vector<1x6x128xf32>
    %5 = vector.shape_cast %4 : vector<1x6x128xf32> to vector<6x128xf32>
    %cst = arith.constant dense<0.000000e+00> : vector<64x128xf32>
    %6 = tpu.matmul %0, %5, %cst {dimension_numbers = #tpu.dot_dimension_numbers<[1], [0], [0], [1], [0, 0, 1, 1], [], []>} : vector<64x6xf32>, vector<6x128xf32>, vector<64x128xf32> -> vector<64x128xf32>
    %7 = vector.broadcast %1 : vector<64x1xf32> to vector<64x128xf32>
    %8 = arith.addf %6, %7 : vector<64x128xf32>
    %cst_10 = arith.constant 0.000000e+00 : f32
    %9 = vector.broadcast %cst_10 : f32 to vector<64x128xf32>
    %10 = arith.maximumf %8, %9 : vector<64x128xf32>
    %cst_11 = arith.constant dense<0.000000e+00> : vector<256x128xf32>
    %11 = tpu.matmul %2, %10, %cst_11 {dimension_numbers = #tpu.dot_dimension_numbers<[1], [0], [0], [1], [0, 0, 1, 1], [], []>} : vector<256x64xf32>, vector<64x128xf32>, vector<256x128xf32> -> vector<256x128xf32>
    %12 = vector.broadcast %3 : vector<256x1xf32> to vector<256x128xf32>
    %13 = arith.addf %11, %12 : vector<256x128xf32>
    %cst_12 = arith.constant 0.000000e+00 : f32
    %14 = vector.broadcast %cst_12 : f32 to vector<256x128xf32>
    %15 = arith.maximumf %13, %14 : vector<256x128xf32>
    %cst_13 = arith.constant dense<0xFF800000> : vector<256xf32>
    %16 = vector.multi_reduction <maximumf>, %15, %cst_13 [1] : vector<256x128xf32> to vector<256xf32>
    %17 = vector.shape_cast %16 : vector<256xf32> to vector<256x1xf32>
    %c0_14 = arith.constant 0 : index
    %c0_15 = arith.constant 0 : index
    %c0_16 = arith.constant 0 : index
    %18 = vector.load %arg6[%c0_14, %c0_15, %c0_16] : memref<2x256x1xf32, #tpu.memory_space<vmem>>, vector<1x256x1xf32>
    %19 = vector.shape_cast %18 : vector<1x256x1xf32> to vector<256x1xf32>
    %20 = vector.shape_cast %17 : vector<256x1xf32> to vector<1x256x1xf32>
    tpu.vector_store %arg6[%c0_14, %c0_15, %c0_16], %20 {strides = array<i32>} : memref<2x256x1xf32, #tpu.memory_space<vmem>>, vector<1x256x1xf32>,
    %c1 = arith.constant 1 : index
    %c0_17 = arith.constant 0 : index
    %c0_18 = arith.constant 0 : index
    %21 = vector.load %arg1[%c1, %c0_17, %c0_18] : memref<2x6x128xf32, #tpu.memory_space<vmem>>, vector<1x6x128xf32>
    %22 = vector.shape_cast %21 : vector<1x6x128xf32> to vector<6x128xf32>
    %cst_19 = arith.constant dense<0.000000e+00> : vector<64x128xf32>
    %23 = tpu.matmul %0, %22, %cst_19 {dimension_numbers = #tpu.dot_dimension_numbers<[1], [0], [0], [1], [0, 0, 1, 1], [], []>} : vector<64x6xf32>, vector<6x128xf32>, vector<64x128xf32> -> vector<64x128xf32>
    %24 = vector.broadcast %1 : vector<64x1xf32> to vector<64x128xf32>
    %25 = arith.addf %23, %24 : vector<64x128xf32>
    %cst_20 = arith.constant 0.000000e+00 : f32
    %26 = vector.broadcast %cst_20 : f32 to vector<64x128xf32>
    %27 = arith.maximumf %25, %26 : vector<64x128xf32>
    %cst_21 = arith.constant dense<0.000000e+00> : vector<256x128xf32>
    %28 = tpu.matmul %2, %27, %cst_21 {dimension_numbers = #tpu.dot_dimension_numbers<[1], [0], [0], [1], [0, 0, 1, 1], [], []>} : vector<256x64xf32>, vector<64x128xf32>, vector<256x128xf32> -> vector<256x128xf32>
    %29 = vector.broadcast %3 : vector<256x1xf32> to vector<256x128xf32>
    %30 = arith.addf %28, %29 : vector<256x128xf32>
    %cst_22 = arith.constant 0.000000e+00 : f32
    %31 = vector.broadcast %cst_22 : f32 to vector<256x128xf32>
    %32 = arith.maximumf %30, %31 : vector<256x128xf32>
    %cst_23 = arith.constant dense<0xFF800000> : vector<256xf32>
    %33 = vector.multi_reduction <maximumf>, %32, %cst_23 [1] : vector<256x128xf32> to vector<256xf32>
    %34 = vector.shape_cast %33 : vector<256xf32> to vector<256x1xf32>
    %c1_24 = arith.constant 1 : index
    %c0_25 = arith.constant 0 : index
    %c0_26 = arith.constant 0 : index
    %35 = vector.load %arg6[%c1_24, %c0_25, %c0_26] : memref<2x256x1xf32, #tpu.memory_space<vmem>>, vector<1x256x1xf32>
    %36 = vector.shape_cast %35 : vector<1x256x1xf32> to vector<256x1xf32>
    %37 = vector.shape_cast %34 : vector<256x1xf32> to vector<1x256x1xf32>
    tpu.vector_store %arg6[%c1_24, %c0_25, %c0_26], %37 {strides = array<i32>} : memref<2x256x1xf32, #tpu.memory_space<vmem>>, vector<1x256x1xf32>,
    return
  }
  func.func @transform_0(%arg0: i32) -> (i32, i32, i32) {
    %c0_i32 = arith.constant 0 : i32
    %c0_i32_0 = arith.constant 0 : i32
    %c0_i32_1 = arith.constant 0 : i32
    return %arg0, %c0_i32, %c0_i32_0 : i32, i32, i32
  }
  func.func @transform_1(%arg0: i32) -> (i32, i32) {
    %c0_i32 = arith.constant 0 : i32
    %c0_i32_0 = arith.constant 0 : i32
    %c0_i32_1 = arith.constant 0 : i32
    return %c0_i32, %c0_i32_0 : i32, i32
  }
  func.func @transform_2(%arg0: i32) -> (i32, i32) {
    %c0_i32 = arith.constant 0 : i32
    %c0_i32_0 = arith.constant 0 : i32
    %c0_i32_1 = arith.constant 0 : i32
    return %c0_i32, %c0_i32_0 : i32, i32
  }
  func.func @transform_3(%arg0: i32) -> (i32, i32) {
    %c0_i32 = arith.constant 0 : i32
    %c0_i32_0 = arith.constant 0 : i32
    %c0_i32_1 = arith.constant 0 : i32
    return %c0_i32, %c0_i32_0 : i32, i32
  }
  func.func @transform_4(%arg0: i32) -> (i32, i32) {
    %c0_i32 = arith.constant 0 : i32
    %c0_i32_0 = arith.constant 0 : i32
    %c0_i32_1 = arith.constant 0 : i32
    return %c0_i32, %c0_i32_0 : i32, i32
  }
  func.func @transform_5(%arg0: i32) -> (i32, i32, i32) {
    %c0_i32 = arith.constant 0 : i32
    %c0_i32_0 = arith.constant 0 : i32
    %c0_i32_1 = arith.constant 0 : i32
    return %arg0, %c0_i32, %c0_i32_0 : i32, i32, i32
  }
}

</mosaic_0001>

<llo_original>
// kernel: tpu_custom_call.1
$region0: #{tpu_custom_call.1}
  #allocation0 [shape = 'u32[]', space=smem, size = 0x4, offset = 0x4, fixed_abs, tag = 'smem constant byte address 0x4 - core index']
  #allocation1 [shape = 'u32[144,128]{1,0:T(1,128)}', space=vmem, size = 0x12000, scoped, tag = 'internal scratch']
  %s0 = inlined_call_operand.vmem [shape: f32[6,6,128], index: 0, kind: input, shape index: {}]
  %s1 = inlined_call_operand.vmem [shape: f32[64,6], index: 1, kind: input, shape index: {}]
  %s2 = inlined_call_operand.vmem [shape: f32[64,1], index: 2, kind: input, shape index: {}]
  %s3 = inlined_call_operand.vmem [shape: f32[256,64], index: 3, kind: input, shape index: {}]
  %s4 = inlined_call_operand.vmem [shape: f32[256,1], index: 4, kind: input, shape index: {}]
  %s5 = inlined_call_operand.vmem [shape: f32[6,256,1], index: 5, kind: output, shape index: {}]
  %s6 = sld [smem:[#allocation0]]
  $region53: #{tpu_custom_call.1} parent=0
    _
  %s8 = ssub.s32 1, %s6
  %s9 = scalar_select 0, %s8, %s6
  loop: start=0, step=1, limit=5
  $region2: #{tpu_custom_call.1} parent=0 // loop_pre_header
    _
  $region3: #{tpu_custom_call.1} parent=0 // loop_header
    %s11 = sphi 0, %s15
    %p12 = scmp.ge.s32.totalorder %s11, 5
    %s21 = sphi 0, %s23
    %s24 = sphi 0, %s21
    %s25 = sphi 0, %s24
    %s41 = sphi 0, %s25
    %s45 = sphi 0, %s45
    %s47 = sphi 0, %s45
    %s48 = sphi 0, %s47
    %s62 = sphi 0, %s48
    %s66 = sphi 0, %s66
    %s68 = sphi 0, %s66
    %s69 = sphi 0, %s68
    %s83 = sphi 0, %s69
    %s87 = sphi 0, %s87
    %s89 = sphi 0, %s87
    %s90 = sphi 0, %s89
    %s104 = sphi 0, %s90
    %s108 = sphi 0, %s108
    %s110 = sphi 0, %s108
    %s111 = sphi 0, %s110
    %s125 = sphi 0, %s111
    %s131 = sphi 0, %s133
    %s134 = sphi 0, %s131
    %s135 = sphi 0, %s134
    %s151 = sphi 0, %s135
  $region4: #{tpu_custom_call.1} parent=0 // loop_header_branch
    %14 = sbr.rel (%p12) target = $region8
  $region5: #{tpu_custom_call.1} parent=0 // loop_body
    %s16 = ssub.s32 %s11, 1
    %s17 = ssub.s32 %s11, 2
    %s18 = sadd.s32 %s11, 1
    %s19 = ssub.s32 %s11, %s18
    %p20 = scmp.eq.s32.totalorder %s19, 0
    %s22 = sadd.s32 %s21, 1
    %s23 = scalar_select %p20, %s21, %s22
    %p26 = pneg %p20
    %p27 = scmp.eq.s32.totalorder %s11, 2
    %p28 = por %p26, %p27
    %p29 = scmp.ne.s32.totalorder %s21, %s24
    %p30 = scmp.eq.s32.totalorder %s11, 0
    %p31 = por %p29, %p30
    %p32 = scmp.ne.s32.totalorder %s21, %s24
    %p33 = scmp.eq.s32.totalorder %s16, 2
    %p34 = por %p32, %p33
    %p35 = scmp.ne.s32.totalorder %s24, %s25
    %p36 = scmp.eq.s32.totalorder %s16, 0
    %p37 = por %p35, %p36
    %p38 = scmp.ne.s32.totalorder %s24, %s25
    %p39 = scmp.eq.s32.totalorder %s17, 2
    %p40 = por %p38, %p39
    %p42 = scmp.ne.s32.totalorder %s25, %s41
    %p43 = scmp.eq.s32.totalorder %s17, 0
    %p44 = por %p42, %p43
    %s46 = sadd.s32 %s45, 1
    %p49 = scmp.eq.s32.totalorder %s11, 2
    %p50 = scmp.ne.s32.totalorder %s45, %s47
    %p51 = scmp.eq.s32.totalorder %s11, 0
    %p52 = por %p50, %p51
    %p53 = scmp.ne.s32.totalorder %s45, %s47
    %p54 = scmp.eq.s32.totalorder %s16, 2
    %p55 = por %p53, %p54
    %p56 = scmp.ne.s32.totalorder %s47, %s48
    %p57 = scmp.eq.s32.totalorder %s16, 0
    %p58 = por %p56, %p57
    %p59 = scmp.ne.s32.totalorder %s47, %s48
    %p60 = scmp.eq.s32.totalorder %s17, 2
    %p61 = por %p59, %p60
    %p63 = scmp.ne.s32.totalorder %s48, %s62
    %p64 = scmp.eq.s32.totalorder %s17, 0
    %p65 = por %p63, %p64
    %s67 = sadd.s32 %s66, 1
    %p70 = scmp.eq.s32.totalorder %s11, 2
    %p71 = scmp.ne.s32.totalorder %s66, %s68
    %p72 = scmp.eq.s32.totalorder %s11, 0
    %p73 = por %p71, %p72
    %p74 = scmp.ne.s32.totalorder %s66, %s68
    %p75 = scmp.eq.s32.totalorder %s16, 2
    %p76 = por %p74, %p75
    %p77 = scmp.ne.s32.totalorder %s68, %s69
    %p78 = scmp.eq.s32.totalorder %s16, 0
    %p79 = por %p77, %p78
    %p80 = scmp.ne.s32.totalorder %s68, %s69
    %p81 = scmp.eq.s32.totalorder %s17, 2
    %p82 = por %p80, %p81
    %p84 = scmp.ne.s32.totalorder %s69, %s83
    %p85 = scmp.eq.s32.totalorder %s17, 0
    %p86 = por %p84, %p85
    %s88 = sadd.s32 %s87, 1
    %p91 = scmp.eq.s32.totalorder %s11, 2
    %p92 = scmp.ne.s32.totalorder %s87, %s89
    %p93 = scmp.eq.s32.totalorder %s11, 0
    %p94 = por %p92, %p93
    %p95 = scmp.ne.s32.totalorder %s87, %s89
    %p96 = scmp.eq.s32.totalorder %s16, 2
    %p97 = por %p95, %p96
    %p98 = scmp.ne.s32.totalorder %s89, %s90
    %p99 = scmp.eq.s32.totalorder %s16, 0
    %p100 = por %p98, %p99
    %p101 = scmp.ne.s32.totalorder %s89, %s90
    %p102 = scmp.eq.s32.totalorder %s17, 2
    %p103 = por %p101, %p102
    %p105 = scmp.ne.s32.totalorder %s90, %s104
    %p106 = scmp.eq.s32.totalorder %s17, 0
    %p107 = por %p105, %p106
    %s109 = sadd.s32 %s108, 1
    %p112 = scmp.eq.s32.totalorder %s11, 2
    %p113 = scmp.ne.s32.totalorder %s108, %s110
    %p114 = scmp.eq.s32.totalorder %s11, 0
    %p115 = por %p113, %p114
    %p116 = scmp.ne.s32.totalorder %s108, %s110
    %p117 = scmp.eq.s32.totalorder %s16, 2
    %p118 = por %p116, %p117
    %p119 = scmp.ne.s32.totalorder %s110, %s111
    %p120 = scmp.eq.s32.totalorder %s16, 0
    %p121 = por %p119, %p120
    %p122 = scmp.ne.s32.totalorder %s110, %s111
    %p123 = scmp.eq.s32.totalorder %s17, 2
    %p124 = por %p122, %p123
    %p126 = scmp.ne.s32.totalorder %s111, %s125
    %p127 = scmp.eq.s32.totalorder %s17, 0
    %p128 = por %p126, %p127
    %s129 = ssub.s32 %s11, %s18
    %p130 = scmp.eq.s32.totalorder %s129, 0
    %s132 = sadd.s32 %s131, 1
    %s133 = scalar_select %p130, %s131, %s132
    %p136 = pneg %p130
    %p137 = scmp.eq.s32.totalorder %s11, 2
    %p138 = por %p136, %p137
    %p139 = scmp.ne.s32.totalorder %s131, %s134
    %p140 = scmp.eq.s32.totalorder %s11, 0
    %p141 = por %p139, %p140
    %p142 = scmp.ne.s32.totalorder %s131, %s134
    %p143 = scmp.eq.s32.totalorder %s16, 2
    %p144 = por %p142, %p143
    %p145 = scmp.ne.s32.totalorder %s134, %s135
    %p146 = scmp.eq.s32.totalorder %s16, 0
    %p147 = por %p145, %p146
    %p148 = scmp.ne.s32.totalorder %s134, %s135
    %p149 = scmp.eq.s32.totalorder %s17, 2
    %p150 = por %p148, %p149
    %p152 = scmp.ne.s32.totalorder %s135, %s151
    %p153 = scmp.eq.s32.totalorder %s17, 0
    %p154 = por %p152, %p153
    %p155 = scmp.le.s32.totalorder 1, %s11
    %p156 = scmp.lt.s32.totalorder %s11, 4
    %p157 = pnand %p155, %p156
    %p158 = pneg %p157
    // Predicated region
    $region9: #{tpu_custom_call.1} parent=5 // pred_check
      _
    $region10: #{tpu_custom_call.1} parent=5 // pred_check_branch
      %160 = sbr.rel (%p157) target = $region12
    $region11: #{tpu_custom_call.1} parent=5 // pred_region
      %s161 = ssub.s32 %s11, 1
      // Predicated region
      $region13: #{tpu_custom_call.1} parent=11 // pred_check
        %p162 = pneg %p58
      $region14: #{tpu_custom_call.1} parent=11 // pred_check_branch
        %164 = sbr.rel (%p162) target = $region16
      $region15: #{tpu_custom_call.1} parent=11 // pred_region
        _
      $region16: #{tpu_custom_call.1} parent=11 // pred_fallthru
        _
      // Predicated region
      $region17: #{tpu_custom_call.1} parent=11 // pred_check
        %p165 = pneg %p79
      $region18: #{tpu_custom_call.1} parent=11 // pred_check_branch
        %167 = sbr.rel (%p165) target = $region20
      $region19: #{tpu_custom_call.1} parent=11 // pred_region
        _
      $region20: #{tpu_custom_call.1} parent=11 // pred_fallthru
        _
      // Predicated region
      $region21: #{tpu_custom_call.1} parent=11 // pred_check
        %p168 = pneg %p100
      $region22: #{tpu_custom_call.1} parent=11 // pred_check_branch
        %170 = sbr.rel (%p168) target = $region24
      $region23: #{tpu_custom_call.1} parent=11 // pred_region
        _
      $region24: #{tpu_custom_call.1} parent=11 // pred_fallthru
        _
      // Predicated region
      $region25: #{tpu_custom_call.1} parent=11 // pred_check
        %p171 = pneg %p121
      $region26: #{tpu_custom_call.1} parent=11 // pred_check_branch
        %173 = sbr.rel (%p171) target = $region28
      $region27: #{tpu_custom_call.1} parent=11 // pred_region
        _
      $region28: #{tpu_custom_call.1} parent=11 // pred_fallthru
        _
    $region12: #{tpu_custom_call.1} parent=5 // pred_fallthru
      _
    %p174 = scmp.lt.s32.totalorder %s11, 3
    // Predicated region
    $region29: #{tpu_custom_call.1} parent=5 // pred_check
      %p175 = pneg %p174
    $region30: #{tpu_custom_call.1} parent=5 // pred_check_branch
      %177 = sbr.rel (%p175) target = $region32
    $region31: #{tpu_custom_call.1} parent=5 // pred_region
      // Predicated region
      $region33: #{tpu_custom_call.1} parent=31 // pred_check
        %p178 = pneg %p31
      $region34: #{tpu_custom_call.1} parent=31 // pred_check_branch
        %180 = sbr.rel (%p178) target = $region36
      $region35: #{tpu_custom_call.1} parent=31 // pred_region
        %s181 = smul.u32 2, %s11
        %p182 = scmp.lt.s32.totalorder %s181, 5
        %s183 = scalar_select %p182, %s181, 5
        %s184 = smul.addr %s183, 8
        %s185 = scalar_lea.vmem %s0, %s184
        %s186 = smul.u32 2, %s11
      $region36: #{tpu_custom_call.1} parent=31 // pred_fallthru
        _
    $region32: #{tpu_custom_call.1} parent=5 // pred_fallthru
      _
    %p187 = scmp.le.s32.totalorder 1, %s11
    %p188 = scmp.lt.s32.totalorder %s11, 4
    %p189 = pnand %p187, %p188
    %p190 = pneg %p189
    // Predicated region
    $region37: #{tpu_custom_call.1} parent=5 // pred_check
      _
    $region38: #{tpu_custom_call.1} parent=5 // pred_check_branch
      %192 = sbr.rel (%p189) target = $region40
    $region39: #{tpu_custom_call.1} parent=5 // pred_region
      %s193 = ssub.s32 %s11, 1
      %s194 = smul.u32 2, %s16
      %p195 = scmp.lt.s32.totalorder %s194, 5
      %s196 = scalar_select %p195, %s194, 5
      %s197 = smul.addr %s196, 8
      %s198 = scalar_lea.vmem %s0, %s197
      %p199 = pneg %p37
      %p200 = pneg %p34
      %p201 = pneg %p58
      %p202 = pneg %p55
      %p203 = pneg %p79
      %p204 = pneg %p76
      %p205 = pneg %p100
      %p206 = pneg %p97
      %p207 = pneg %p121
      %p208 = pneg %p118
      %p209 = pneg %p147
      %p210 = pneg %p144
      %s211 = smul.u32 2, %s16
      %p212 = scmp.lt.s32.totalorder %s211, 5
      %s213 = scalar_select %p212, %s211, 5
      %s214 = smul.addr %s213, 32
      %s215 = smul.addr %s214, 8
      %s216 = scalar_lea.vmem %s5, %s215
      %s217 = smul.u32 2, %s16
      %p218 = scmp.lt.s32.totalorder %s217, 5
      %s219 = scalar_select %p218, %s217, 5
      %s220 = smul.addr %s219, 8
      %s221 = scalar_lea.vmem %s0, %s220
      %s222 = smul.u32 2, %s16
      %s223 = smul.u32 2, %s16
      %p224 = scmp.lt.s32.totalorder %s223, 5
      %s225 = scalar_select %p224, %s223, 5
      %s226 = smul.addr %s225, 32
      %s227 = smul.addr %s226, 8
      %s228 = scalar_lea.vmem %s5, %s227
      %s229 = smul.u32 2, %s16
      %v230 = vld [vmem:[%s1] sm:$0xff]
      %v231 = vld [vmem:[%s1 + $0x8] sm:$0xff]
      %v232 = vld [vmem:[%s1 + $0x10] sm:$0xff]
      %v233 = vld [vmem:[%s1 + $0x18] sm:$0xff]
      %v234 = vld [vmem:[%s1 + $0x20] sm:$0xff]
      %v235 = vld [vmem:[%s1 + $0x28] sm:$0xff]
      %v236 = vld [vmem:[%s1 + $0x30] sm:$0xff]
      %v237 = vld [vmem:[%s1 + $0x38] sm:$0xff]
      %v238 = vld [vmem:[%s2] sm:$0xff]
      %v239 = vld [vmem:[%s2 + $0x8] sm:$0xff]
      %v240 = vld [vmem:[%s2 + $0x10] sm:$0xff]
      %v241 = vld [vmem:[%s2 + $0x18] sm:$0xff]
      %v242 = vld [vmem:[%s2 + $0x20] sm:$0xff]
      %v243 = vld [vmem:[%s2 + $0x28] sm:$0xff]
      %v244 = vld [vmem:[%s2 + $0x30] sm:$0xff]
      %v245 = vld [vmem:[%s2 + $0x38] sm:$0xff]
      %v246 = vld [vmem:[%s3] sm:$0xff]
      %v247 = vld [vmem:[%s3 + $0x8] sm:$0xff]
      %v248 = vld [vmem:[%s3 + $0x10] sm:$0xff]
      %v249 = vld [vmem:[%s3 + $0x18] sm:$0xff]
      %v250 = vld [vmem:[%s3 + $0x20] sm:$0xff]
      %v251 = vld [vmem:[%s3 + $0x28] sm:$0xff]
      %v252 = vld [vmem:[%s3 + $0x30] sm:$0xff]
      %v253 = vld [vmem:[%s3 + $0x38] sm:$0xff]
      %v254 = vld [vmem:[%s3 + $0x40] sm:$0xff]
      %v255 = vld [vmem:[%s3 + $0x48] sm:$0xff]
      %v256 = vld [vmem:[%s3 + $0x50] sm:$0xff]
      %v257 = vld [vmem:[%s3 + $0x58] sm:$0xff]
      %v258 = vld [vmem:[%s3 + $0x60] sm:$0xff]
      %v259 = vld [vmem:[%s3 + $0x68] sm:$0xff]
      %v260 = vld [vmem:[%s3 + $0x70] sm:$0xff]
      %v261 = vld [vmem:[%s3 + $0x78] sm:$0xff]
      %v262 = vld [vmem:[%s3 + $0x80] sm:$0xff]
      %v263 = vld [vmem:[%s3 + $0x88] sm:$0xff]
      %v264 = vld [vmem:[%s3 + $0x90] sm:$0xff]
      %v265 = vld [vmem:[%s3 + $0x98] sm:$0xff]
      %v266 = vld [vmem:[%s3 + $0xa0] sm:$0xff]
      %v267 = vld [vmem:[%s3 + $0xa8] sm:$0xff]
      %v268 = vld [vmem:[%s3 + $0xb0] sm:$0xff]
      %v269 = vld [vmem:[%s3 + $0xb8] sm:$0xff]
      %v270 = vld [vmem:[%s3 + $0xc0] sm:$0xff]
      %v271 = vld [vmem:[%s3 + $0xc8] sm:$0xff]
      %v272 = vld [vmem:[%s3 + $0xd0] sm:$0xff]
      %v273 = vld [vmem:[%s3 + $0xd8] sm:$0xff]
      %v274 = vld [vmem:[%s3 + $0xe0] sm:$0xff]
      %v275 = vld [vmem:[%s3 + $0xe8] sm:$0xff]
      %v276 = vld [vmem:[%s3 + $0xf0] sm:$0xff]
      %v277 = vld [vmem:[%s3 + $0xf8] sm:$0xff]
      %v278 = vld [vmem:[%s4] sm:$0xff]
      %v279 = vld [vmem:[%s4 + $0x8] sm:$0xff]
      %v280 = vld [vmem:[%s4 + $0x10] sm:$0xff]
      %v281 = vld [vmem:[%s4 + $0x18] sm:$0xff]
      %v282 = vld [vmem:[%s4 + $0x20] sm:$0xff]
      %v283 = vld [vmem:[%s4 + $0x28] sm:$0xff]
      %v284 = vld [vmem:[%s4 + $0x30] sm:$0xff]
      %v285 = vld [vmem:[%s4 + $0x38] sm:$0xff]
      %v286 = vld [vmem:[%s4 + $0x40] sm:$0xff]
      %v287 = vld [vmem:[%s4 + $0x48] sm:$0xff]
      %v288 = vld [vmem:[%s4 + $0x50] sm:$0xff]
      %v289 = vld [vmem:[%s4 + $0x58] sm:$0xff]
      %v290 = vld [vmem:[%s4 + $0x60] sm:$0xff]
      %v291 = vld [vmem:[%s4 + $0x68] sm:$0xff]
      %v292 = vld [vmem:[%s4 + $0x70] sm:$0xff]
      %v293 = vld [vmem:[%s4 + $0x78] sm:$0xff]
      %v294 = vld [vmem:[%s4 + $0x80] sm:$0xff]
      %v295 = vld [vmem:[%s4 + $0x88] sm:$0xff]
      %v296 = vld [vmem:[%s4 + $0x90] sm:$0xff]
      %v297 = vld [vmem:[%s4 + $0x98] sm:$0xff]
      %v298 = vld [vmem:[%s4 + $0xa0] sm:$0xff]
      %v299 = vld [vmem:[%s4 + $0xa8] sm:$0xff]
      %v300 = vld [vmem:[%s4 + $0xb0] sm:$0xff]
      %v301 = vld [vmem:[%s4 + $0xb8] sm:$0xff]
      %v302 = vld [vmem:[%s4 + $0xc0] sm:$0xff]
      %v303 = vld [vmem:[%s4 + $0xc8] sm:$0xff]
      %v304 = vld [vmem:[%s4 + $0xd0] sm:$0xff]
      %v305 = vld [vmem:[%s4 + $0xd8] sm:$0xff]
      %v306 = vld [vmem:[%s4 + $0xe0] sm:$0xff]
      %v307 = vld [vmem:[%s4 + $0xe8] sm:$0xff]
      %v308 = vld [vmem:[%s4 + $0xf0] sm:$0xff]
      %v309 = vld [vmem:[%s4 + $0xf8] sm:$0xff]
      %v310 = vld [vmem:[%s221] sm:$0x3f]
      %312 = vset.pattern.permute.xlu0 0
      %313 = vperm.xlu0 %312, %v238
      %v314 = vpop.permute.xlu0 %313
      %317 = vset.pattern.permute.xlu0 0
      %318 = vperm.xlu0 %317, %v239
      %v319 = vpop.permute.xlu0 %318
      %322 = vset.pattern.permute.xlu0 0
      %323 = vperm.xlu0 %322, %v240
      %v324 = vpop.permute.xlu0 %323
      %327 = vset.pattern.permute.xlu0 0
      %328 = vperm.xlu0 %327, %v241
      %v329 = vpop.permute.xlu0 %328
      %332 = vset.pattern.permute.xlu0 0
      %333 = vperm.xlu0 %332, %v242
      %v334 = vpop.permute.xlu0 %333
      %337 = vset.pattern.permute.xlu0 0
      %338 = vperm.xlu0 %337, %v243
      %v339 = vpop.permute.xlu0 %338
      %342 = vset.pattern.permute.xlu0 0
      %343 = vperm.xlu0 %342, %v244
      %v344 = vpop.permute.xlu0 %343
      %347 = vset.pattern.permute.xlu0 0
      %348 = vperm.xlu0 %347, %v245
      %v349 = vpop.permute.xlu0 %348
      %vm351 = vcmask 48128
      %v353 = vsel %vm351, %v230, 0
      %v356 = vsel %vm351, %v231, 0
      %v359 = vsel %vm351, %v232, 0
      %v362 = vsel %vm351, %v233, 0
      %v365 = vsel %vm351, %v234, 0
      %v368 = vsel %vm351, %v235, 0
      %v371 = vsel %vm351, %v236, 0
      %v374 = vsel %vm351, %v237, 0
      %vm376 = vcmask 1045504
      %v378 = vsel %vm376, %v310, 0
      %380 = vmatprep.subr.mxu0 0.0
      %381 = vmatpush1.msra.mxu0 0.0
      %382 = vmatprep.subr.mxu0 0.0
      %383 = vmatpush1.msra.mxu0 0.0
      %384 = vmatprep.subr.mxu0 0.0
      %385 = vmatpush1.msra.mxu0 0.0
      %386 = vmatprep.subr.mxu0 0.0
      %387 = vmatpush1.msra.mxu0 0.0
      %388 = vmatprep.subr.mxu0 0.0
      %389 = vmatpush1.msra.mxu0 0.0
      %390 = vmatprep.subr.mxu0 0.0
      %391 = vmatpush1.msra.mxu0 0.0
      %392 = vmatprep.subr.mxu0 0.0
      %393 = vmatpush1.msra.mxu0 0.0
      %394 = vmatprep.subr.mxu0 0.0
      %395 = vmatpush1.msra.mxu0 0.0
      %396 = vmatprep.subr.mxu0 0.0
      %397 = vmatpush1.msra.mxu0 0.0
      %398 = vmatprep.subr.mxu0 0.0
      %399 = vmatpush1.msra.mxu0 0.0
      %400 = vmatprep.subr.mxu0 0.0
      %401 = vmatpush1.msra.mxu0 0.0
      %402 = vmatprep.subr.mxu0 0.0
      %403 = vmatpush1.msra.mxu0 0.0
      %404 = vmatprep.subr.mxu0 0.0
      %405 = vmatpush1.msra.mxu0 0.0
      %406 = vmatprep.subr.mxu0 0.0
      %407 = vmatpush1.msra.mxu0 0.0
      %408 = vmatprep.subr.mxu0 0.0
      %409 = vmatpush1.msra.mxu0 0.0
      %410 = vmatprep.subr.mxu0 0.0
      %411 = vmatpush1.msra.mxu0 %v378
      %412 = vmatprep.subr.mxu0 0.0
      %413 = vmatpush2.msra.mxu0 0.0
      %414 = vmatprep.subr.mxu0 0.0
      %415 = vmatpush2.msra.mxu0 0.0
      %416 = vmatprep.subr.mxu0 0.0
      %417 = vmatpush2.msra.mxu0 0.0
      %418 = vmatprep.subr.mxu0 0.0
      %419 = vmatpush2.msra.mxu0 0.0
      %420 = vmatprep.subr.mxu0 0.0
      %421 = vmatpush2.msra.mxu0 0.0
      %422 = vmatprep.subr.mxu0 0.0
      %423 = vmatpush2.msra.mxu0 0.0
      %424 = vmatprep.subr.mxu0 0.0
      %425 = vmatpush2.msra.mxu0 0.0
      %426 = vmatprep.subr.mxu0 0.0
      %427 = vmatpush2.msra.mxu0 0.0
      %428 = vmatprep.subr.mxu0 0.0
      %429 = vmatpush2.msra.mxu0 0.0
      %430 = vmatprep.subr.mxu0 0.0
      %431 = vmatpush2.msra.mxu0 0.0
      %432 = vmatprep.subr.mxu0 0.0
      %433 = vmatpush2.msra.mxu0 0.0
      %434 = vmatprep.subr.mxu0 0.0
      %435 = vmatpush2.msra.mxu0 0.0
      %436 = vmatprep.subr.mxu0 0.0
      %437 = vmatpush2.msra.mxu0 0.0
      %438 = vmatprep.subr.mxu0 0.0
      %439 = vmatpush2.msra.mxu0 0.0
      %440 = vmatprep.subr.mxu0 0.0
      %441 = vmatpush2.msra.mxu0 0.0
      %442 = vmatprep.subr.mxu0 0.0
      %443 = vmatpush2.msra.mxu0 0.0
      %444 = vmatprep.mubr.f32.mxu0 0.0
      %445 = vmatmul.mubr.f32.gmra.mxu0 %v353
      %v446 = vpop.f32.mrf.mxu0
      %v447 = vadd.f32 %v314, %v446
      %v448 = vpop.f32.mrf.mxu0
      %449 = vmatprep.mubr.f32.mxu0 0.0
      %450 = vmatmul.mubr.f32.gmra.mxu0 %v356
      %v451 = vpop.f32.mrf.mxu0
      %v452 = vadd.f32 %v319, %v451
      %v453 = vpop.f32.mrf.mxu0
      %454 = vmatprep.mubr.f32.mxu0 0.0
      %455 = vmatmul.mubr.f32.gmra.mxu0 %v359
      %v456 = vpop.f32.mrf.mxu0
      %v457 = vadd.f32 %v324, %v456
      %v458 = vpop.f32.mrf.mxu0
      %459 = vmatprep.mubr.f32.mxu0 0.0
      %460 = vmatmul.mubr.f32.gmra.mxu0 %v362
      %v461 = vpop.f32.mrf.mxu0
      %v462 = vadd.f32 %v329, %v461
      %v463 = vpop.f32.mrf.mxu0
      %464 = vmatprep.mubr.f32.mxu0 0.0
      %465 = vmatmul.mubr.f32.gmra.mxu0 %v365
      %v466 = vpop.f32.mrf.mxu0
      %v467 = vadd.f32 %v334, %v466
      %v468 = vpop.f32.mrf.mxu0
      %469 = vmatprep.mubr.f32.mxu0 0.0
      %470 = vmatmul.mubr.f32.gmra.mxu0 %v368
      %v471 = vpop.f32.mrf.mxu0
      %v472 = vadd.f32 %v339, %v471
      %v473 = vpop.f32.mrf.mxu0
      %474 = vmatprep.mubr.f32.mxu0 0.0
      %475 = vmatmul.mubr.f32.gmra.mxu0 %v371
      %v476 = vpop.f32.mrf.mxu0
      %v477 = vadd.f32 %v344, %v476
      %v478 = vpop.f32.mrf.mxu0
      %479 = vmatprep.mubr.f32.mxu0 0.0
      %480 = vmatmul.mubr.f32.gmra.mxu0 %v374
      %v481 = vpop.f32.mrf.mxu0
      %v482 = vadd.f32 %v349, %v481
      %v483 = vpop.f32.mrf.mxu0
      %484 = vdwg.mxu0
      %v485 = vmax.f32 %v447, 0.0
      %v486 = vmax.f32 %v452, 0.0
      %v487 = vmax.f32 %v457, 0.0
      %v488 = vmax.f32 %v462, 0.0
      %v489 = vmax.f32 %v467, 0.0
      %v490 = vmax.f32 %v472, 0.0
      %v491 = vmax.f32 %v477, 0.0
      %v492 = vmax.f32 %v482, 0.0
      %494 = vset.pattern.permute.xlu0 0
      %495 = vperm.xlu0 %494, %v278
      %v496 = vpop.permute.xlu0 %495
      %499 = vset.pattern.permute.xlu0 0
      %500 = vperm.xlu0 %499, %v279
      %v501 = vpop.permute.xlu0 %500
      %504 = vset.pattern.permute.xlu0 0
      %505 = vperm.xlu0 %504, %v280
      %v506 = vpop.permute.xlu0 %505
      %509 = vset.pattern.permute.xlu0 0
      %510 = vperm.xlu0 %509, %v281
      %v511 = vpop.permute.xlu0 %510
      %514 = vset.pattern.permute.xlu0 0
      %515 = vperm.xlu0 %514, %v282
      %v516 = vpop.permute.xlu0 %515
      %519 = vset.pattern.permute.xlu0 0
      %520 = vperm.xlu0 %519, %v283
      %v521 = vpop.permute.xlu0 %520
      %524 = vset.pattern.permute.xlu0 0
      %525 = vperm.xlu0 %524, %v284
      %v526 = vpop.permute.xlu0 %525
      %529 = vset.pattern.permute.xlu0 0
      %530 = vperm.xlu0 %529, %v285
      %v531 = vpop.permute.xlu0 %530
      %534 = vset.pattern.permute.xlu0 0
      %535 = vperm.xlu0 %534, %v286
      %v536 = vpop.permute.xlu0 %535
      %539 = vset.pattern.permute.xlu0 0
      %540 = vperm.xlu0 %539, %v287
      %v541 = vpop.permute.xlu0 %540
      %544 = vset.pattern.permute.xlu0 0
      %545 = vperm.xlu0 %544, %v288
      %v546 = vpop.permute.xlu0 %545
      %549 = vset.pattern.permute.xlu0 0
      %550 = vperm.xlu0 %549, %v289
      %v551 = vpop.permute.xlu0 %550
      %554 = vset.pattern.permute.xlu0 0
      %555 = vperm.xlu0 %554, %v290
      %v556 = vpop.permute.xlu0 %555
      %559 = vset.pattern.permute.xlu0 0
      %560 = vperm.xlu0 %559, %v291
      %v561 = vpop.permute.xlu0 %560
      %564 = vset.pattern.permute.xlu0 0
      %565 = vperm.xlu0 %564, %v292
      %v566 = vpop.permute.xlu0 %565
      %569 = vset.pattern.permute.xlu0 0
      %570 = vperm.xlu0 %569, %v293
      %v571 = vpop.permute.xlu0 %570
      %574 = vset.pattern.permute.xlu0 0
      %575 = vperm.xlu0 %574, %v294
      %v576 = vpop.permute.xlu0 %575
      %579 = vset.pattern.permute.xlu0 0
      %580 = vperm.xlu0 %579, %v295
      %v581 = vpop.permute.xlu0 %580
      %584 = vset.pattern.permute.xlu0 0
      %585 = vperm.xlu0 %584, %v296
      %v586 = vpop.permute.xlu0 %585
      %589 = vset.pattern.permute.xlu0 0
      %590 = vperm.xlu0 %589, %v297
      %v591 = vpop.permute.xlu0 %590
      %594 = vset.pattern.permute.xlu0 0
      %595 = vperm.xlu0 %594, %v298
      %v596 = vpop.permute.xlu0 %595
      %599 = vset.pattern.permute.xlu0 0
      %600 = vperm.xlu0 %599, %v299
      %v601 = vpop.permute.xlu0 %600
      %604 = vset.pattern.permute.xlu0 0
      %605 = vperm.xlu0 %604, %v300
      %v606 = vpop.permute.xlu0 %605
      %609 = vset.pattern.permute.xlu0 0
      %610 = vperm.xlu0 %609, %v301
      %v611 = vpop.permute.xlu0 %610
      %614 = vset.pattern.permute.xlu0 0
      %615 = vperm.xlu0 %614, %v302
      %v616 = vpop.permute.xlu0 %615
      %619 = vset.pattern.permute.xlu0 0
      %620 = vperm.xlu0 %619, %v303
      %v621 = vpop.permute.xlu0 %620
      %624 = vset.pattern.permute.xlu0 0
      %625 = vperm.xlu0 %624, %v304
      %v626 = vpop.permute.xlu0 %625
      %629 = vset.pattern.permute.xlu0 0
      %630 = vperm.xlu0 %629, %v305
      %v631 = vpop.permute.xlu0 %630
      %634 = vset.pattern.permute.xlu0 0
      %635 = vperm.xlu0 %634, %v306
      %v636 = vpop.permute.xlu0 %635
      %639 = vset.pattern.permute.xlu0 0
      %640 = vperm.xlu0 %639, %v307
      %v641 = vpop.permute.xlu0 %640
      %644 = vset.pattern.permute.xlu0 0
      %645 = vperm.xlu0 %644, %v308
      %v646 = vpop.permute.xlu0 %645
      %649 = vset.pattern.permute.xlu0 0
      %650 = vperm.xlu0 %649, %v309
      %v651 = vpop.permute.xlu0 %650
      %vm653 = vcmask 523264
      %v655 = vsel %vm653, %v246, 0
      %v658 = vsel %vm653, %v247, 0
      %v661 = vsel %vm653, %v248, 0
      %v664 = vsel %vm653, %v249, 0
      %v667 = vsel %vm653, %v250, 0
      %v670 = vsel %vm653, %v251, 0
      %v673 = vsel %vm653, %v252, 0
      %v676 = vsel %vm653, %v253, 0
      %v679 = vsel %vm653, %v254, 0
      %v682 = vsel %vm653, %v255, 0
      %v685 = vsel %vm653, %v256, 0
      %v688 = vsel %vm653, %v257, 0
      %v691 = vsel %vm653, %v258, 0
      %v694 = vsel %vm653, %v259, 0
      %v697 = vsel %vm653, %v260, 0
      %v700 = vsel %vm653, %v261, 0
      %v703 = vsel %vm653, %v262, 0
      %v706 = vsel %vm653, %v263, 0
      %v709 = vsel %vm653, %v264, 0
      %v712 = vsel %vm653, %v265, 0
      %v715 = vsel %vm653, %v266, 0
      %v718 = vsel %vm653, %v267, 0
      %v721 = vsel %vm653, %v268, 0
      %v724 = vsel %vm653, %v269, 0
      %v727 = vsel %vm653, %v270, 0
      %v730 = vsel %vm653, %v271, 0
      %v733 = vsel %vm653, %v272, 0
      %v736 = vsel %vm653, %v273, 0
      %v739 = vsel %vm653, %v274, 0
      %v742 = vsel %vm653, %v275, 0
      %v745 = vsel %vm653, %v276, 0
      %v748 = vsel %vm653, %v277, 0
      %750 = vmatprep.subr.mxu0 0.0
      %751 = vmatpush1.msra.mxu0 0.0
      %752 = vmatprep.subr.mxu0 0.0
      %753 = vmatpush1.msra.mxu0 0.0
      %754 = vmatprep.subr.mxu0 0.0
      %755 = vmatpush1.msra.mxu0 0.0
      %756 = vmatprep.subr.mxu0 0.0
      %757 = vmatpush1.msra.mxu0 0.0
      %758 = vmatprep.subr.mxu0 0.0
      %759 = vmatpush1.msra.mxu0 0.0
      %760 = vmatprep.subr.mxu0 0.0
      %761 = vmatpush1.msra.mxu0 0.0
      %762 = vmatprep.subr.mxu0 0.0
      %763 = vmatpush1.msra.mxu0 0.0
      %764 = vmatprep.subr.mxu0 0.0
      %765 = vmatpush1.msra.mxu0 0.0
      %766 = vmatprep.subr.mxu0 0.0
      %767 = vmatpush1.msra.mxu0 %v492
      %768 = vmatprep.subr.mxu0 0.0
      %769 = vmatpush1.msra.mxu0 %v491
      %770 = vmatprep.subr.mxu0 0.0
      %771 = vmatpush1.msra.mxu0 %v490
      %772 = vmatprep.subr.mxu0 0.0
      %773 = vmatpush1.msra.mxu0 %v489
      %774 = vmatprep.subr.mxu0 0.0
      %775 = vmatpush1.msra.mxu0 %v488
      %776 = vmatprep.subr.mxu0 0.0
      %777 = vmatpush1.msra.mxu0 %v487
      %778 = vmatprep.subr.mxu0 0.0
      %779 = vmatpush1.msra.mxu0 %v486
      %780 = vmatprep.subr.mxu0 0.0
      %781 = vmatpush1.msra.mxu0 %v485
      %782 = vmatprep.subr.mxu0 0.0
      %783 = vmatpush2.msra.mxu0 0.0
      %784 = vmatprep.subr.mxu0 0.0
      %785 = vmatpush2.msra.mxu0 0.0
      %786 = vmatprep.subr.mxu0 0.0
      %787 = vmatpush2.msra.mxu0 0.0
      %788 = vmatprep.subr.mxu0 0.0
      %789 = vmatpush2.msra.mxu0 0.0
      %790 = vmatprep.subr.mxu0 0.0
      %791 = vmatpush2.msra.mxu0 0.0
      %792 = vmatprep.subr.mxu0 0.0
      %793 = vmatpush2.msra.mxu0 0.0
      %794 = vmatprep.subr.mxu0 0.0
      %795 = vmatpush2.msra.mxu0 0.0
      %796 = vmatprep.subr.mxu0 0.0
      %797 = vmatpush2.msra.mxu0 0.0
      %798 = vmatprep.subr.mxu0 0.0
      %799 = vmatpush2.msra.mxu0 0.0
      %800 = vmatprep.subr.mxu0 0.0
      %801 = vmatpush2.msra.mxu0 0.0
      %802 = vmatprep.subr.mxu0 0.0
      %803 = vmatpush2.msra.mxu0 0.0
      %804 = vmatprep.subr.mxu0 0.0
      %805 = vmatpush2.msra.mxu0 0.0
      %806 = vmatprep.subr.mxu0 0.0
      %807 = vmatpush2.msra.mxu0 0.0
      %808 = vmatprep.subr.mxu0 0.0
      %809 = vmatpush2.msra.mxu0 0.0
      %810 = vmatprep.subr.mxu0 0.0
      %811 = vmatpush2.msra.mxu0 0.0
      %812 = vmatprep.subr.mxu0 0.0
      %813 = vmatpush2.msra.mxu0 0.0
      %814 = vmatprep.mubr.f32.mxu0 0.0
      %815 = vmatmul.mubr.f32.gmra.mxu0 %v655
      %v816 = vpop.f32.mrf.mxu0
      %v817 = vadd.f32 %v496, %v816
      %v818 = vpop.f32.mrf.mxu0
      %819 = vmatprep.mubr.f32.mxu0 0.0
      %820 = vmatmul.mubr.f32.gmra.mxu0 %v658
      %v821 = vpop.f32.mrf.mxu0
      %v822 = vadd.f32 %v501, %v821
      %v823 = vpop.f32.mrf.mxu0
      %824 = vmatprep.mubr.f32.mxu0 0.0
      %825 = vmatmul.mubr.f32.gmra.mxu0 %v661
      %v826 = vpop.f32.mrf.mxu0
      %v827 = vadd.f32 %v506, %v826
      %v828 = vpop.f32.mrf.mxu0
      %829 = vmatprep.mubr.f32.mxu0 0.0
      %830 = vmatmul.mubr.f32.gmra.mxu0 %v664
      %v831 = vpop.f32.mrf.mxu0
      %v832 = vadd.f32 %v511, %v831
      %v833 = vpop.f32.mrf.mxu0
      %834 = vmatprep.mubr.f32.mxu0 0.0
      %835 = vmatmul.mubr.f32.gmra.mxu0 %v667
      %v836 = vpop.f32.mrf.mxu0
      %v837 = vadd.f32 %v516, %v836
      %v838 = vpop.f32.mrf.mxu0
      %839 = vmatprep.mubr.f32.mxu0 0.0
      %840 = vmatmul.mubr.f32.gmra.mxu0 %v670
      %v841 = vpop.f32.mrf.mxu0
      %v842 = vadd.f32 %v521, %v841
      %v843 = vpop.f32.mrf.mxu0
      %844 = vmatprep.mubr.f32.mxu0 0.0
      %845 = vmatmul.mubr.f32.gmra.mxu0 %v673
      %v846 = vpop.f32.mrf.mxu0
      %v847 = vadd.f32 %v526, %v846
      %v848 = vpop.f32.mrf.mxu0
      %849 = vmatprep.mubr.f32.mxu0 0.0
      %850 = vmatmul.mubr.f32.gmra.mxu0 %v676
      %v851 = vpop.f32.mrf.mxu0
      %v852 = vadd.f32 %v531, %v851
      %v853 = vpop.f32.mrf.mxu0
      %854 = vmatprep.mubr.f32.mxu0 0.0
      %855 = vmatmul.mubr.f32.gmra.mxu0 %v679
      %v856 = vpop.f32.mrf.mxu0
      %v857 = vadd.f32 %v536, %v856
      %v858 = vpop.f32.mrf.mxu0
      %859 = vmatprep.mubr.f32.mxu0 0.0
      %860 = vmatmul.mubr.f32.gmra.mxu0 %v682
      %v861 = vpop.f32.mrf.mxu0
      %v862 = vadd.f32 %v541, %v861
      %v863 = vpop.f32.mrf.mxu0
      %864 = vmatprep.mubr.f32.mxu0 0.0
      %865 = vmatmul.mubr.f32.gmra.mxu0 %v685
      %v866 = vpop.f32.mrf.mxu0
      %v867 = vadd.f32 %v546, %v866
      %v868 = vpop.f32.mrf.mxu0
      %869 = vmatprep.mubr.f32.mxu0 0.0
      %870 = vmatmul.mubr.f32.gmra.mxu0 %v688
      %v871 = vpop.f32.mrf.mxu0
      %v872 = vadd.f32 %v551, %v871
      %v873 = vpop.f32.mrf.mxu0
      %874 = vmatprep.mubr.f32.mxu0 0.0
      %875 = vmatmul.mubr.f32.gmra.mxu0 %v691
      %v876 = vpop.f32.mrf.mxu0
      %v877 = vadd.f32 %v556, %v876
      %v878 = vpop.f32.mrf.mxu0
      %879 = vmatprep.mubr.f32.mxu0 0.0
      %880 = vmatmul.mubr.f32.gmra.mxu0 %v694
      %v881 = vpop.f32.mrf.mxu0
      %v882 = vadd.f32 %v561, %v881
      %v883 = vpop.f32.mrf.mxu0
      %884 = vmatprep.mubr.f32.mxu0 0.0
      %885 = vmatmul.mubr.f32.gmra.mxu0 %v697
      %v886 = vpop.f32.mrf.mxu0
      %v887 = vadd.f32 %v566, %v886
      %v888 = vpop.f32.mrf.mxu0
      %889 = vmatprep.mubr.f32.mxu0 0.0
      %890 = vmatmul.mubr.f32.gmra.mxu0 %v700
      %v891 = vpop.f32.mrf.mxu0
      %v892 = vadd.f32 %v571, %v891
      %v893 = vpop.f32.mrf.mxu0
      %894 = vmatprep.mubr.f32.mxu0 0.0
      %895 = vmatmul.mubr.f32.gmra.mxu0 %v703
      %v896 = vpop.f32.mrf.mxu0
      %v897 = vadd.f32 %v576, %v896
      %v898 = vpop.f32.mrf.mxu0
      %899 = vmatprep.mubr.f32.mxu0 0.0
      %900 = vmatmul.mubr.f32.gmra.mxu0 %v706
      %v901 = vpop.f32.mrf.mxu0
      %v902 = vadd.f32 %v581, %v901
      %v903 = vpop.f32.mrf.mxu0
      %904 = vmatprep.mubr.f32.mxu0 0.0
      %905 = vmatmul.mubr.f32.gmra.mxu0 %v709
      %v906 = vpop.f32.mrf.mxu0
      %v907 = vadd.f32 %v586, %v906
      %v908 = vpop.f32.mrf.mxu0
      %909 = vmatprep.mubr.f32.mxu0 0.0
      %910 = vmatmul.mubr.f32.gmra.mxu0 %v712
      %v911 = vpop.f32.mrf.mxu0
      %v912 = vadd.f32 %v591, %v911
      %v913 = vpop.f32.mrf.mxu0
      %914 = vmatprep.mubr.f32.mxu0 0.0
      %915 = vmatmul.mubr.f32.gmra.mxu0 %v715
      %v916 = vpop.f32.mrf.mxu0
      %v917 = vadd.f32 %v596, %v916
      %v918 = vpop.f32.mrf.mxu0
      %919 = vmatprep.mubr.f32.mxu0 0.0
      %920 = vmatmul.mubr.f32.gmra.mxu0 %v718
      %v921 = vpop.f32.mrf.mxu0
      %v922 = vadd.f32 %v601, %v921
      %v923 = vpop.f32.mrf.mxu0
      %924 = vmatprep.mubr.f32.mxu0 0.0
      %925 = vmatmul.mubr.f32.gmra.mxu0 %v721
      %v926 = vpop.f32.mrf.mxu0
      %v927 = vadd.f32 %v606, %v926
      %v928 = vpop.f32.mrf.mxu0
      %929 = vmatprep.mubr.f32.mxu0 0.0
      %930 = vmatmul.mubr.f32.gmra.mxu0 %v724
      %v931 = vpop.f32.mrf.mxu0
      %v932 = vadd.f32 %v611, %v931
      %v933 = vpop.f32.mrf.mxu0
      %934 = vmatprep.mubr.f32.mxu0 0.0
      %935 = vmatmul.mubr.f32.gmra.mxu0 %v727
      %v936 = vpop.f32.mrf.mxu0
      %v937 = vadd.f32 %v616, %v936
      %v938 = vpop.f32.mrf.mxu0
      %939 = vmatprep.mubr.f32.mxu0 0.0
      %940 = vmatmul.mubr.f32.gmra.mxu0 %v730
      %v941 = vpop.f32.mrf.mxu0
      %v942 = vadd.f32 %v621, %v941
      %v943 = vpop.f32.mrf.mxu0
      %944 = vmatprep.mubr.f32.mxu0 0.0
      %945 = vmatmul.mubr.f32.gmra.mxu0 %v733
      %v946 = vpop.f32.mrf.mxu0
      %v947 = vadd.f32 %v626, %v946
      %v948 = vpop.f32.mrf.mxu0
      %949 = vmatprep.mubr.f32.mxu0 0.0
      %950 = vmatmul.mubr.f32.gmra.mxu0 %v736
      %v951 = vpop.f32.mrf.mxu0
      %v952 = vadd.f32 %v631, %v951
      %v953 = vpop.f32.mrf.mxu0
      %954 = vmatprep.mubr.f32.mxu0 0.0
      %955 = vmatmul.mubr.f32.gmra.mxu0 %v739
      %v956 = vpop.f32.mrf.mxu0
      %v957 = vadd.f32 %v636, %v956
      %v958 = vpop.f32.mrf.mxu0
      %959 = vmatprep.mubr.f32.mxu0 0.0
      %960 = vmatmul.mubr.f32.gmra.mxu0 %v742
      %v961 = vpop.f32.mrf.mxu0
      %v962 = vadd.f32 %v641, %v961
      %v963 = vpop.f32.mrf.mxu0
      %964 = vmatprep.mubr.f32.mxu0 0.0
      %965 = vmatmul.mubr.f32.gmra.mxu0 %v745
      %v966 = vpop.f32.mrf.mxu0
      %v967 = vadd.f32 %v646, %v966
      %v968 = vpop.f32.mrf.mxu0
      %969 = vmatprep.mubr.f32.mxu0 0.0
      %970 = vmatmul.mubr.f32.gmra.mxu0 %v748
      %v971 = vpop.f32.mrf.mxu0
      %v972 = vadd.f32 %v651, %v971
      %v973 = vpop.f32.mrf.mxu0
      %974 = vdwg.mxu0
      %v975 = vmax.f32 %v817, 0.0
      %v976 = vmax.f32 %v822, 0.0
      %v977 = vmax.f32 %v827, 0.0
      %v978 = vmax.f32 %v832, 0.0
      %v979 = vmax.f32 %v837, 0.0
      %v980 = vmax.f32 %v842, 0.0
      %v981 = vmax.f32 %v847, 0.0
      %v982 = vmax.f32 %v852, 0.0
      %v983 = vmax.f32 %v857, 0.0
      %v984 = vmax.f32 %v862, 0.0
      %v985 = vmax.f32 %v867, 0.0
      %v986 = vmax.f32 %v872, 0.0
      %v987 = vmax.f32 %v877, 0.0
      %v988 = vmax.f32 %v882, 0.0
      %v989 = vmax.f32 %v887, 0.0
      %v990 = vmax.f32 %v892, 0.0
      %v991 = vmax.f32 %v897, 0.0
      %v992 = vmax.f32 %v902, 0.0
      %v993 = vmax.f32 %v907, 0.0
      %v994 = vmax.f32 %v912, 0.0
      %v995 = vmax.f32 %v917, 0.0
      %v996 = vmax.f32 %v922, 0.0
      %v997 = vmax.f32 %v927, 0.0
      %v998 = vmax.f32 %v932, 0.0
      %v999 = vmax.f32 %v937, 0.0
      %v1000 = vmax.f32 %v942, 0.0
      %v1001 = vmax.f32 %v947, 0.0
      %v1002 = vmax.f32 %v952, 0.0
      %v1003 = vmax.f32 %v957, 0.0
      %v1004 = vmax.f32 %v962, 0.0
      %v1005 = vmax.f32 %v967, 0.0
      %v1006 = vmax.f32 %v972, 0.0
      %1007 = vmax.xlane.f32.xlu0 %v975
      %v1008 = vpop.xlane.xlu0 %1007
      %1009 = vmax.xlane.f32.xlu0 %v976
      %v1010 = vpop.xlane.xlu0 %1009
      %1011 = vmax.xlane.f32.xlu0 %v977
      %v1012 = vpop.xlane.xlu0 %1011
      %1013 = vmax.xlane.f32.xlu0 %v978
      %v1014 = vpop.xlane.xlu0 %1013
      %1015 = vmax.xlane.f32.xlu0 %v979
      %v1016 = vpop.xlane.xlu0 %1015
      %1017 = vmax.xlane.f32.xlu0 %v980
      %v1018 = vpop.xlane.xlu0 %1017
      %1019 = vmax.xlane.f32.xlu0 %v981
      %v1020 = vpop.xlane.xlu0 %1019
      %1021 = vmax.xlane.f32.xlu0 %v982
      %v1022 = vpop.xlane.xlu0 %1021
      %1023 = vmax.xlane.f32.xlu0 %v983
      %v1024 = vpop.xlane.xlu0 %1023
      %1025 = vmax.xlane.f32.xlu0 %v984
      %v1026 = vpop.xlane.xlu0 %1025
      %1027 = vmax.xlane.f32.xlu0 %v985
      %v1028 = vpop.xlane.xlu0 %1027
      %1029 = vmax.xlane.f32.xlu0 %v986
      %v1030 = vpop.xlane.xlu0 %1029
      %1031 = vmax.xlane.f32.xlu0 %v987
      %v1032 = vpop.xlane.xlu0 %1031
      %1033 = vmax.xlane.f32.xlu0 %v988
      %v1034 = vpop.xlane.xlu0 %1033
      %1035 = vmax.xlane.f32.xlu0 %v989
      %v1036 = vpop.xlane.xlu0 %1035
      %1037 = vmax.xlane.f32.xlu0 %v990
      %v1038 = vpop.xlane.xlu0 %1037
      %1039 = vmax.xlane.f32.xlu0 %v991
      %v1040 = vpop.xlane.xlu0 %1039
      %1041 = vmax.xlane.f32.xlu0 %v992
      %v1042 = vpop.xlane.xlu0 %1041
      %1043 = vmax.xlane.f32.xlu0 %v993
      %v1044 = vpop.xlane.xlu0 %1043
      %1045 = vmax.xlane.f32.xlu0 %v994
      %v1046 = vpop.xlane.xlu0 %1045
      %1047 = vmax.xlane.f32.xlu0 %v995
      %v1048 = vpop.xlane.xlu0 %1047
      %1049 = vmax.xlane.f32.xlu0 %v996
      %v1050 = vpop.xlane.xlu0 %1049
      %1051 = vmax.xlane.f32.xlu0 %v997
      %v1052 = vpop.xlane.xlu0 %1051
      %1053 = vmax.xlane.f32.xlu0 %v998
      %v1054 = vpop.xlane.xlu0 %1053
      %1055 = vmax.xlane.f32.xlu0 %v999
      %v1056 = vpop.xlane.xlu0 %1055
      %1057 = vmax.xlane.f32.xlu0 %v1000
      %v1058 = vpop.xlane.xlu0 %1057
      %1059 = vmax.xlane.f32.xlu0 %v1001
      %v1060 = vpop.xlane.xlu0 %1059
      %1061 = vmax.xlane.f32.xlu0 %v1002
      %v1062 = vpop.xlane.xlu0 %1061
      %1063 = vmax.xlane.f32.xlu0 %v1003
      %v1064 = vpop.xlane.xlu0 %1063
      %1065 = vmax.xlane.f32.xlu0 %v1004
      %v1066 = vpop.xlane.xlu0 %1065
      %1067 = vmax.xlane.f32.xlu0 %v1005
      %v1068 = vpop.xlane.xlu0 %1067
      %1069 = vmax.xlane.f32.xlu0 %v1006
      %v1070 = vpop.xlane.xlu0 %1069
      %vm1071 = vcmask 7168
      %1072 = vst.msk [vmem:[%s228] sm:$0xff] %vm1071, %v1008
      %1073 = vst.msk [vmem:[%s228 + $0x8] sm:$0xff] %vm1071, %v1010
      %1074 = vst.msk [vmem:[%s228 + $0x10] sm:$0xff] %vm1071, %v1012
      %1075 = vst.msk [vmem:[%s228 + $0x18] sm:$0xff] %vm1071, %v1014
      %1076 = vst.msk [vmem:[%s228 + $0x20] sm:$0xff] %vm1071, %v1016
      %1077 = vst.msk [vmem:[%s228 + $0x28] sm:$0xff] %vm1071, %v1018
      %1078 = vst.msk [vmem:[%s228 + $0x30] sm:$0xff] %vm1071, %v1020
      %1079 = vst.msk [vmem:[%s228 + $0x38] sm:$0xff] %vm1071, %v1022
      %1080 = vst.msk [vmem:[%s228 + $0x40] sm:$0xff] %vm1071, %v1024
      %1081 = vst.msk [vmem:[%s228 + $0x48] sm:$0xff] %vm1071, %v1026
      %1082 = vst.msk [vmem:[%s228 + $0x50] sm:$0xff] %vm1071, %v1028
      %1083 = vst.msk [vmem:[%s228 + $0x58] sm:$0xff] %vm1071, %v1030
      %1084 = vst.msk [vmem:[%s228 + $0x60] sm:$0xff] %vm1071, %v1032
      %1085 = vst.msk [vmem:[%s228 + $0x68] sm:$0xff] %vm1071, %v1034
      %1086 = vst.msk [vmem:[%s228 + $0x70] sm:$0xff] %vm1071, %v1036
      %1087 = vst.msk [vmem:[%s228 + $0x78] sm:$0xff] %vm1071, %v1038
      %1088 = vst.msk [vmem:[%s228 + $0x80] sm:$0xff] %vm1071, %v1040
      %1089 = vst.msk [vmem:[%s228 + $0x88] sm:$0xff] %vm1071, %v1042
      %1090 = vst.msk [vmem:[%s228 + $0x90] sm:$0xff] %vm1071, %v1044
      %1091 = vst.msk [vmem:[%s228 + $0x98] sm:$0xff] %vm1071, %v1046
      %1092 = vst.msk [vmem:[%s228 + $0xa0] sm:$0xff] %vm1071, %v1048
      %1093 = vst.msk [vmem:[%s228 + $0xa8] sm:$0xff] %vm1071, %v1050
      %1094 = vst.msk [vmem:[%s228 + $0xb0] sm:$0xff] %vm1071, %v1052
      %1095 = vst.msk [vmem:[%s228 + $0xb8] sm:$0xff] %vm1071, %v1054
      %1096 = vst.msk [vmem:[%s228 + $0xc0] sm:$0xff] %vm1071, %v1056
      %1097 = vst.msk [vmem:[%s228 + $0xc8] sm:$0xff] %vm1071, %v1058
      %1098 = vst.msk [vmem:[%s228 + $0xd0] sm:$0xff] %vm1071, %v1060
      %1099 = vst.msk [vmem:[%s228 + $0xd8] sm:$0xff] %vm1071, %v1062
      %1100 = vst.msk [vmem:[%s228 + $0xe0] sm:$0xff] %vm1071, %v1064
      %1101 = vst.msk [vmem:[%s228 + $0xe8] sm:$0xff] %vm1071, %v1066
      %1102 = vst.msk [vmem:[%s228 + $0xf0] sm:$0xff] %vm1071, %v1068
      %1103 = vst.msk [vmem:[%s228 + $0xf8] sm:$0xff] %vm1071, %v1070
      %s1104 = scalar_lea.vmem %s221, 8
      %v1105 = vld [vmem:[%s1104] sm:$0x3f]
      %v1107 = vsel %vm376, %v1105, 0
      %1109 = vmatprep.subr.mxu0 0.0
      %1110 = vmatpush1.msra.mxu0 0.0
      %1111 = vmatprep.subr.mxu0 0.0
      %1112 = vmatpush1.msra.mxu0 0.0
      %1113 = vmatprep.subr.mxu0 0.0
      %1114 = vmatpush1.msra.mxu0 0.0
      %1115 = vmatprep.subr.mxu0 0.0
      %1116 = vmatpush1.msra.mxu0 0.0
      %1117 = vmatprep.subr.mxu0 0.0
      %1118 = vmatpush1.msra.mxu0 0.0
      %1119 = vmatprep.subr.mxu0 0.0
      %1120 = vmatpush1.msra.mxu0 0.0
      %1121 = vmatprep.subr.mxu0 0.0
      %1122 = vmatpush1.msra.mxu0 0.0
      %1123 = vmatprep.subr.mxu0 0.0
      %1124 = vmatpush1.msra.mxu0 0.0
      %1125 = vmatprep.subr.mxu0 0.0
      %1126 = vmatpush1.msra.mxu0 0.0
      %1127 = vmatprep.subr.mxu0 0.0
      %1128 = vmatpush1.msra.mxu0 0.0
      %1129 = vmatprep.subr.mxu0 0.0
      %1130 = vmatpush1.msra.mxu0 0.0
      %1131 = vmatprep.subr.mxu0 0.0
      %1132 = vmatpush1.msra.mxu0 0.0
      %1133 = vmatprep.subr.mxu0 0.0
      %1134 = vmatpush1.msra.mxu0 0.0
      %1135 = vmatprep.subr.mxu0 0.0
      %1136 = vmatpush1.msra.mxu0 0.0
      %1137 = vmatprep.subr.mxu0 0.0
      %1138 = vmatpush1.msra.mxu0 0.0
      %1139 = vmatprep.subr.mxu0 0.0
      %1140 = vmatpush1.msra.mxu0 %v1107
      %1141 = vmatprep.subr.mxu0 0.0
      %1142 = vmatpush2.msra.mxu0 0.0
      %1143 = vmatprep.subr.mxu0 0.0
      %1144 = vmatpush2.msra.mxu0 0.0
      %1145 = vmatprep.subr.mxu0 0.0
      %1146 = vmatpush2.msra.mxu0 0.0
      %1147 = vmatprep.subr.mxu0 0.0
      %1148 = vmatpush2.msra.mxu0 0.0
      %1149 = vmatprep.subr.mxu0 0.0
      %1150 = vmatpush2.msra.mxu0 0.0
      %1151 = vmatprep.subr.mxu0 0.0
      %1152 = vmatpush2.msra.mxu0 0.0
      %1153 = vmatprep.subr.mxu0 0.0
      %1154 = vmatpush2.msra.mxu0 0.0
      %1155 = vmatprep.subr.mxu0 0.0
      %1156 = vmatpush2.msra.mxu0 0.0
      %1157 = vmatprep.subr.mxu0 0.0
      %1158 = vmatpush2.msra.mxu0 0.0
      %1159 = vmatprep.subr.mxu0 0.0
      %1160 = vmatpush2.msra.mxu0 0.0
      %1161 = vmatprep.subr.mxu0 0.0
      %1162 = vmatpush2.msra.mxu0 0.0
      %1163 = vmatprep.subr.mxu0 0.0
      %1164 = vmatpush2.msra.mxu0 0.0
      %1165 = vmatprep.subr.mxu0 0.0
      %1166 = vmatpush2.msra.mxu0 0.0
      %1167 = vmatprep.subr.mxu0 0.0
      %1168 = vmatpush2.msra.mxu0 0.0
      %1169 = vmatprep.subr.mxu0 0.0
      %1170 = vmatpush2.msra.mxu0 0.0
      %1171 = vmatprep.subr.mxu0 0.0
      %1172 = vmatpush2.msra.mxu0 0.0
      %1173 = vmatprep.mubr.f32.mxu0 0.0
      %1174 = vmatmul.mubr.f32.gmra.mxu0 %v353
      %v1175 = vpop.f32.mrf.mxu0
      %v1176 = vadd.f32 %v314, %v1175
      %v1177 = vpop.f32.mrf.mxu0
      %1178 = vmatprep.mubr.f32.mxu0 0.0
      %1179 = vmatmul.mubr.f32.gmra.mxu0 %v356
      %v1180 = vpop.f32.mrf.mxu0
      %v1181 = vadd.f32 %v319, %v1180
      %v1182 = vpop.f32.mrf.mxu0
      %1183 = vmatprep.mubr.f32.mxu0 0.0
      %1184 = vmatmul.mubr.f32.gmra.mxu0 %v359
      %v1185 = vpop.f32.mrf.mxu0
      %v1186 = vadd.f32 %v324, %v1185
      %v1187 = vpop.f32.mrf.mxu0
      %1188 = vmatprep.mubr.f32.mxu0 0.0
      %1189 = vmatmul.mubr.f32.gmra.mxu0 %v362
      %v1190 = vpop.f32.mrf.mxu0
      %v1191 = vadd.f32 %v329, %v1190
      %v1192 = vpop.f32.mrf.mxu0
      %1193 = vmatprep.mubr.f32.mxu0 0.0
      %1194 = vmatmul.mubr.f32.gmra.mxu0 %v365
      %v1195 = vpop.f32.mrf.mxu0
      %v1196 = vadd.f32 %v334, %v1195
      %v1197 = vpop.f32.mrf.mxu0
      %1198 = vmatprep.mubr.f32.mxu0 0.0
      %1199 = vmatmul.mubr.f32.gmra.mxu0 %v368
      %v1200 = vpop.f32.mrf.mxu0
      %v1201 = vadd.f32 %v339, %v1200
      %v1202 = vpop.f32.mrf.mxu0
      %1203 = vmatprep.mubr.f32.mxu0 0.0
      %1204 = vmatmul.mubr.f32.gmra.mxu0 %v371
      %v1205 = vpop.f32.mrf.mxu0
      %v1206 = vadd.f32 %v344, %v1205
      %v1207 = vpop.f32.mrf.mxu0
      %1208 = vmatprep.mubr.f32.mxu0 0.0
      %1209 = vmatmul.mubr.f32.gmra.mxu0 %v374
      %v1210 = vpop.f32.mrf.mxu0
      %v1211 = vadd.f32 %v349, %v1210
      %v1212 = vpop.f32.mrf.mxu0
      %1213 = vdwg.mxu0
      %v1214 = vmax.f32 %v1176, 0.0
      %v1215 = vmax.f32 %v1181, 0.0
      %v1216 = vmax.f32 %v1186, 0.0
      %v1217 = vmax.f32 %v1191, 0.0
      %v1218 = vmax.f32 %v1196, 0.0
      %v1219 = vmax.f32 %v1201, 0.0
      %v1220 = vmax.f32 %v1206, 0.0
      %v1221 = vmax.f32 %v1211, 0.0
      %1222 = vmatprep.subr.mxu0 0.0
      %1223 = vmatpush1.msra.mxu0 0.0
      %1224 = vmatprep.subr.mxu0 0.0
      %1225 = vmatpush1.msra.mxu0 0.0
      %1226 = vmatprep.subr.mxu0 0.0
      %1227 = vmatpush1.msra.mxu0 0.0
      %1228 = vmatprep.subr.mxu0 0.0
      %1229 = vmatpush1.msra.mxu0 0.0
      %1230 = vmatprep.subr.mxu0 0.0
      %1231 = vmatpush1.msra.mxu0 0.0
      %1232 = vmatprep.subr.mxu0 0.0
      %1233 = vmatpush1.msra.mxu0 0.0
      %1234 = vmatprep.subr.mxu0 0.0
      %1235 = vmatpush1.msra.mxu0 0.0
      %1236 = vmatprep.subr.mxu0 0.0
      %1237 = vmatpush1.msra.mxu0 0.0
      %1238 = vmatprep.subr.mxu0 0.0
      %1239 = vmatpush1.msra.mxu0 %v1221
      %1240 = vmatprep.subr.mxu0 0.0
      %1241 = vmatpush1.msra.mxu0 %v1220
      %1242 = vmatprep.subr.mxu0 0.0
      %1243 = vmatpush1.msra.mxu0 %v1219
      %1244 = vmatprep.subr.mxu0 0.0
      %1245 = vmatpush1.msra.mxu0 %v1218
      %1246 = vmatprep.subr.mxu0 0.0
      %1247 = vmatpush1.msra.mxu0 %v1217
      %1248 = vmatprep.subr.mxu0 0.0
      %1249 = vmatpush1.msra.mxu0 %v1216
      %1250 = vmatprep.subr.mxu0 0.0
      %1251 = vmatpush1.msra.mxu0 %v1215
      %1252 = vmatprep.subr.mxu0 0.0
      %1253 = vmatpush1.msra.mxu0 %v1214
      %1254 = vmatprep.subr.mxu0 0.0
      %1255 = vmatpush2.msra.mxu0 0.0
      %1256 = vmatprep.subr.mxu0 0.0
      %1257 = vmatpush2.msra.mxu0 0.0
      %1258 = vmatprep.subr.mxu0 0.0
      %1259 = vmatpush2.msra.mxu0 0.0
      %1260 = vmatprep.subr.mxu0 0.0
      %1261 = vmatpush2.msra.mxu0 0.0
      %1262 = vmatprep.subr.mxu0 0.0
      %1263 = vmatpush2.msra.mxu0 0.0
      %1264 = vmatprep.subr.mxu0 0.0
      %1265 = vmatpush2.msra.mxu0 0.0
      %1266 = vmatprep.subr.mxu0 0.0
      %1267 = vmatpush2.msra.mxu0 0.0
      %1268 = vmatprep.subr.mxu0 0.0
      %1269 = vmatpush2.msra.mxu0 0.0
      %1270 = vmatprep.subr.mxu0 0.0
      %1271 = vmatpush2.msra.mxu0 0.0
      %1272 = vmatprep.subr.mxu0 0.0
      %1273 = vmatpush2.msra.mxu0 0.0
      %1274 = vmatprep.subr.mxu0 0.0
      %1275 = vmatpush2.msra.mxu0 0.0
      %1276 = vmatprep.subr.mxu0 0.0
      %1277 = vmatpush2.msra.mxu0 0.0
      %1278 = vmatprep.subr.mxu0 0.0
      %1279 = vmatpush2.msra.mxu0 0.0
      %1280 = vmatprep.subr.mxu0 0.0
      %1281 = vmatpush2.msra.mxu0 0.0
      %1282 = vmatprep.subr.mxu0 0.0
      %1283 = vmatpush2.msra.mxu0 0.0
      %1284 = vmatprep.subr.mxu0 0.0
      %1285 = vmatpush2.msra.mxu0 0.0
      %1286 = vmatprep.mubr.f32.mxu0 0.0
      %1287 = vmatmul.mubr.f32.gmra.mxu0 %v655
      %v1288 = vpop.f32.mrf.mxu0
      %v1289 = vadd.f32 %v496, %v1288
      %v1290 = vpop.f32.mrf.mxu0
      %1291 = vmatprep.mubr.f32.mxu0 0.0
      %1292 = vmatmul.mubr.f32.gmra.mxu0 %v658
      %v1293 = vpop.f32.mrf.mxu0
      %v1294 = vadd.f32 %v501, %v1293
      %v1295 = vpop.f32.mrf.mxu0
      %1296 = vmatprep.mubr.f32.mxu0 0.0
      %1297 = vmatmul.mubr.f32.gmra.mxu0 %v661
      %v1298 = vpop.f32.mrf.mxu0
      %v1299 = vadd.f32 %v506, %v1298
      %v1300 = vpop.f32.mrf.mxu0
      %1301 = vmatprep.mubr.f32.mxu0 0.0
      %1302 = vmatmul.mubr.f32.gmra.mxu0 %v664
      %v1303 = vpop.f32.mrf.mxu0
      %v1304 = vadd.f32 %v511, %v1303
      %v1305 = vpop.f32.mrf.mxu0
      %1306 = vmatprep.mubr.f32.mxu0 0.0
      %1307 = vmatmul.mubr.f32.gmra.mxu0 %v667
      %v1308 = vpop.f32.mrf.mxu0
      %v1309 = vadd.f32 %v516, %v1308
      %v1310 = vpop.f32.mrf.mxu0
      %1311 = vmatprep.mubr.f32.mxu0 0.0
      %1312 = vmatmul.mubr.f32.gmra.mxu0 %v670
      %v1313 = vpop.f32.mrf.mxu0
      %v1314 = vadd.f32 %v521, %v1313
      %v1315 = vpop.f32.mrf.mxu0
      %1316 = vmatprep.mubr.f32.mxu0 0.0
      %1317 = vmatmul.mubr.f32.gmra.mxu0 %v673
      %v1318 = vpop.f32.mrf.mxu0
      %v1319 = vadd.f32 %v526, %v1318
      %v1320 = vpop.f32.mrf.mxu0
      %1321 = vmatprep.mubr.f32.mxu0 0.0
      %1322 = vmatmul.mubr.f32.gmra.mxu0 %v676
      %v1323 = vpop.f32.mrf.mxu0
      %v1324 = vadd.f32 %v531, %v1323
      %v1325 = vpop.f32.mrf.mxu0
      %1326 = vmatprep.mubr.f32.mxu0 0.0
      %1327 = vmatmul.mubr.f32.gmra.mxu0 %v679
      %v1328 = vpop.f32.mrf.mxu0
      %v1329 = vadd.f32 %v536, %v1328
      %v1330 = vpop.f32.mrf.mxu0
      %1331 = vmatprep.mubr.f32.mxu0 0.0
      %1332 = vmatmul.mubr.f32.gmra.mxu0 %v682
      %v1333 = vpop.f32.mrf.mxu0
      %v1334 = vadd.f32 %v541, %v1333
      %v1335 = vpop.f32.mrf.mxu0
      %1336 = vmatprep.mubr.f32.mxu0 0.0
      %1337 = vmatmul.mubr.f32.gmra.mxu0 %v685
      %v1338 = vpop.f32.mrf.mxu0
      %v1339 = vadd.f32 %v546, %v1338
      %v1340 = vpop.f32.mrf.mxu0
      %1341 = vmatprep.mubr.f32.mxu0 0.0
      %1342 = vmatmul.mubr.f32.gmra.mxu0 %v688
      %v1343 = vpop.f32.mrf.mxu0
      %v1344 = vadd.f32 %v551, %v1343
      %v1345 = vpop.f32.mrf.mxu0
      %1346 = vmatprep.mubr.f32.mxu0 0.0
      %1347 = vmatmul.mubr.f32.gmra.mxu0 %v691
      %v1348 = vpop.f32.mrf.mxu0
      %v1349 = vadd.f32 %v556, %v1348
      %v1350 = vpop.f32.mrf.mxu0
      %1351 = vmatprep.mubr.f32.mxu0 0.0
      %1352 = vmatmul.mubr.f32.gmra.mxu0 %v694
      %v1353 = vpop.f32.mrf.mxu0
      %v1354 = vadd.f32 %v561, %v1353
      %v1355 = vpop.f32.mrf.mxu0
      %1356 = vmatprep.mubr.f32.mxu0 0.0
      %1357 = vmatmul.mubr.f32.gmra.mxu0 %v697
      %v1358 = vpop.f32.mrf.mxu0
      %v1359 = vadd.f32 %v566, %v1358
      %v1360 = vpop.f32.mrf.mxu0
      %1361 = vmatprep.mubr.f32.mxu0 0.0
      %1362 = vmatmul.mubr.f32.gmra.mxu0 %v700
      %v1363 = vpop.f32.mrf.mxu0
      %v1364 = vadd.f32 %v571, %v1363
      %v1365 = vpop.f32.mrf.mxu0
      %1366 = vmatprep.mubr.f32.mxu0 0.0
      %1367 = vmatmul.mubr.f32.gmra.mxu0 %v703
      %v1368 = vpop.f32.mrf.mxu0
      %v1369 = vadd.f32 %v576, %v1368
      %v1370 = vpop.f32.mrf.mxu0
      %1371 = vmatprep.mubr.f32.mxu0 0.0
      %1372 = vmatmul.mubr.f32.gmra.mxu0 %v706
      %v1373 = vpop.f32.mrf.mxu0
      %v1374 = vadd.f32 %v581, %v1373
      %v1375 = vpop.f32.mrf.mxu0
      %1376 = vmatprep.mubr.f32.mxu0 0.0
      %1377 = vmatmul.mubr.f32.gmra.mxu0 %v709
      %v1378 = vpop.f32.mrf.mxu0
      %v1379 = vadd.f32 %v586, %v1378
      %v1380 = vpop.f32.mrf.mxu0
      %1381 = vmatprep.mubr.f32.mxu0 0.0
      %1382 = vmatmul.mubr.f32.gmra.mxu0 %v712
      %v1383 = vpop.f32.mrf.mxu0
      %v1384 = vadd.f32 %v591, %v1383
      %v1385 = vpop.f32.mrf.mxu0
      %1386 = vmatprep.mubr.f32.mxu0 0.0
      %1387 = vmatmul.mubr.f32.gmra.mxu0 %v715
      %v1388 = vpop.f32.mrf.mxu0
      %v1389 = vadd.f32 %v596, %v1388
      %v1390 = vpop.f32.mrf.mxu0
      %1391 = vmatprep.mubr.f32.mxu0 0.0
      %1392 = vmatmul.mubr.f32.gmra.mxu0 %v718
      %v1393 = vpop.f32.mrf.mxu0
      %v1394 = vadd.f32 %v601, %v1393
      %v1395 = vpop.f32.mrf.mxu0
      %1396 = vmatprep.mubr.f32.mxu0 0.0
      %1397 = vmatmul.mubr.f32.gmra.mxu0 %v721
      %v1398 = vpop.f32.mrf.mxu0
      %v1399 = vadd.f32 %v606, %v1398
      %v1400 = vpop.f32.mrf.mxu0
      %1401 = vmatprep.mubr.f32.mxu0 0.0
      %1402 = vmatmul.mubr.f32.gmra.mxu0 %v724
      %v1403 = vpop.f32.mrf.mxu0
      %v1404 = vadd.f32 %v611, %v1403
      %v1405 = vpop.f32.mrf.mxu0
      %1406 = vmatprep.mubr.f32.mxu0 0.0
      %1407 = vmatmul.mubr.f32.gmra.mxu0 %v727
      %v1408 = vpop.f32.mrf.mxu0
      %v1409 = vadd.f32 %v616, %v1408
      %v1410 = vpop.f32.mrf.mxu0
      %1411 = vmatprep.mubr.f32.mxu0 0.0
      %1412 = vmatmul.mubr.f32.gmra.mxu0 %v730
      %v1413 = vpop.f32.mrf.mxu0
      %v1414 = vadd.f32 %v621, %v1413
      %v1415 = vpop.f32.mrf.mxu0
      %1416 = vmatprep.mubr.f32.mxu0 0.0
      %1417 = vmatmul.mubr.f32.gmra.mxu0 %v733
      %v1418 = vpop.f32.mrf.mxu0
      %v1419 = vadd.f32 %v626, %v1418
      %v1420 = vpop.f32.mrf.mxu0
      %1421 = vmatprep.mubr.f32.mxu0 0.0
      %1422 = vmatmul.mubr.f32.gmra.mxu0 %v736
      %v1423 = vpop.f32.mrf.mxu0
      %v1424 = vadd.f32 %v631, %v1423
      %v1425 = vpop.f32.mrf.mxu0
      %1426 = vmatprep.mubr.f32.mxu0 0.0
      %1427 = vmatmul.mubr.f32.gmra.mxu0 %v739
      %v1428 = vpop.f32.mrf.mxu0
      %v1429 = vadd.f32 %v636, %v1428
      %v1430 = vpop.f32.mrf.mxu0
      %1431 = vmatprep.mubr.f32.mxu0 0.0
      %1432 = vmatmul.mubr.f32.gmra.mxu0 %v742
      %v1433 = vpop.f32.mrf.mxu0
      %v1434 = vadd.f32 %v641, %v1433
      %v1435 = vpop.f32.mrf.mxu0
      %1436 = vmatprep.mubr.f32.mxu0 0.0
      %1437 = vmatmul.mubr.f32.gmra.mxu0 %v745
      %v1438 = vpop.f32.mrf.mxu0
      %v1439 = vadd.f32 %v646, %v1438
      %v1440 = vpop.f32.mrf.mxu0
      %1441 = vmatprep.mubr.f32.mxu0 0.0
      %1442 = vmatmul.mubr.f32.gmra.mxu0 %v748
      %v1443 = vpop.f32.mrf.mxu0
      %v1444 = vadd.f32 %v651, %v1443
      %v1445 = vpop.f32.mrf.mxu0
      %1446 = vdwg.mxu0
      %v1447 = vmax.f32 %v1289, 0.0
      %v1448 = vmax.f32 %v1294, 0.0
      %v1449 = vmax.f32 %v1299, 0.0
      %v1450 = vmax.f32 %v1304, 0.0
      %v1451 = vmax.f32 %v1309, 0.0
      %v1452 = vmax.f32 %v1314, 0.0
      %v1453 = vmax.f32 %v1319, 0.0
      %v1454 = vmax.f32 %v1324, 0.0
      %v1455 = vmax.f32 %v1329, 0.0
      %v1456 = vmax.f32 %v1334, 0.0
      %v1457 = vmax.f32 %v1339, 0.0
      %v1458 = vmax.f32 %v1344, 0.0
      %v1459 = vmax.f32 %v1349, 0.0
      %v1460 = vmax.f32 %v1354, 0.0
      %v1461 = vmax.f32 %v1359, 0.0
      %v1462 = vmax.f32 %v1364, 0.0
      %v1463 = vmax.f32 %v1369, 0.0
      %v1464 = vmax.f32 %v1374, 0.0
      %v1465 = vmax.f32 %v1379, 0.0
      %v1466 = vmax.f32 %v1384, 0.0
      %v1467 = vmax.f32 %v1389, 0.0
      %v1468 = vmax.f32 %v1394, 0.0
      %v1469 = vmax.f32 %v1399, 0.0
      %v1470 = vmax.f32 %v1404, 0.0
      %v1471 = vmax.f32 %v1409, 0.0
      %v1472 = vmax.f32 %v1414, 0.0
      %v1473 = vmax.f32 %v1419, 0.0
      %v1474 = vmax.f32 %v1424, 0.0
      %v1475 = vmax.f32 %v1429, 0.0
      %v1476 = vmax.f32 %v1434, 0.0
      %v1477 = vmax.f32 %v1439, 0.0
      %v1478 = vmax.f32 %v1444, 0.0
      %1479 = vmax.xlane.f32.xlu0 %v1447
      %v1480 = vpop.xlane.xlu0 %1479
      %1481 = vmax.xlane.f32.xlu0 %v1448
      %v1482 = vpop.xlane.xlu0 %1481
      %1483 = vmax.xlane.f32.xlu0 %v1449
      %v1484 = vpop.xlane.xlu0 %1483
      %1485 = vmax.xlane.f32.xlu0 %v1450
      %v1486 = vpop.xlane.xlu0 %1485
      %1487 = vmax.xlane.f32.xlu0 %v1451
      %v1488 = vpop.xlane.xlu0 %1487
      %1489 = vmax.xlane.f32.xlu0 %v1452
      %v1490 = vpop.xlane.xlu0 %1489
      %1491 = vmax.xlane.f32.xlu0 %v1453
      %v1492 = vpop.xlane.xlu0 %1491
      %1493 = vmax.xlane.f32.xlu0 %v1454
      %v1494 = vpop.xlane.xlu0 %1493
      %1495 = vmax.xlane.f32.xlu0 %v1455
      %v1496 = vpop.xlane.xlu0 %1495
      %1497 = vmax.xlane.f32.xlu0 %v1456
      %v1498 = vpop.xlane.xlu0 %1497
      %1499 = vmax.xlane.f32.xlu0 %v1457
      %v1500 = vpop.xlane.xlu0 %1499
      %1501 = vmax.xlane.f32.xlu0 %v1458
      %v1502 = vpop.xlane.xlu0 %1501
      %1503 = vmax.xlane.f32.xlu0 %v1459
      %v1504 = vpop.xlane.xlu0 %1503
      %1505 = vmax.xlane.f32.xlu0 %v1460
      %v1506 = vpop.xlane.xlu0 %1505
      %1507 = vmax.xlane.f32.xlu0 %v1461
      %v1508 = vpop.xlane.xlu0 %1507
      %1509 = vmax.xlane.f32.xlu0 %v1462
      %v1510 = vpop.xlane.xlu0 %1509
      %1511 = vmax.xlane.f32.xlu0 %v1463
      %v1512 = vpop.xlane.xlu0 %1511
      %1513 = vmax.xlane.f32.xlu0 %v1464
      %v1514 = vpop.xlane.xlu0 %1513
      %1515 = vmax.xlane.f32.xlu0 %v1465
      %v1516 = vpop.xlane.xlu0 %1515
      %1517 = vmax.xlane.f32.xlu0 %v1466
      %v1518 = vpop.xlane.xlu0 %1517
      %1519 = vmax.xlane.f32.xlu0 %v1467
      %v1520 = vpop.xlane.xlu0 %1519
      %1521 = vmax.xlane.f32.xlu0 %v1468
      %v1522 = vpop.xlane.xlu0 %1521
      %1523 = vmax.xlane.f32.xlu0 %v1469
      %v1524 = vpop.xlane.xlu0 %1523
      %1525 = vmax.xlane.f32.xlu0 %v1470
      %v1526 = vpop.xlane.xlu0 %1525
      %1527 = vmax.xlane.f32.xlu0 %v1471
      %v1528 = vpop.xlane.xlu0 %1527
      %1529 = vmax.xlane.f32.xlu0 %v1472
      %v1530 = vpop.xlane.xlu0 %1529
      %1531 = vmax.xlane.f32.xlu0 %v1473
      %v1532 = vpop.xlane.xlu0 %1531
      %1533 = vmax.xlane.f32.xlu0 %v1474
      %v1534 = vpop.xlane.xlu0 %1533
      %1535 = vmax.xlane.f32.xlu0 %v1475
      %v1536 = vpop.xlane.xlu0 %1535
      %1537 = vmax.xlane.f32.xlu0 %v1476
      %v1538 = vpop.xlane.xlu0 %1537
      %1539 = vmax.xlane.f32.xlu0 %v1477
      %v1540 = vpop.xlane.xlu0 %1539
      %1541 = vmax.xlane.f32.xlu0 %v1478
      %v1542 = vpop.xlane.xlu0 %1541
      %s1543 = scalar_lea.vmem %s228, 256
      %1544 = vst.msk [vmem:[%s1543] sm:$0xff] %vm1071, %v1480
      %1545 = vst.msk [vmem:[%s1543 + $0x8] sm:$0xff] %vm1071, %v1482
      %1546 = vst.msk [vmem:[%s1543 + $0x10] sm:$0xff] %vm1071, %v1484
      %1547 = vst.msk [vmem:[%s1543 + $0x18] sm:$0xff] %vm1071, %v1486
      %1548 = vst.msk [vmem:[%s1543 + $0x20] sm:$0xff] %vm1071, %v1488
      %1549 = vst.msk [vmem:[%s1543 + $0x28] sm:$0xff] %vm1071, %v1490
      %1550 = vst.msk [vmem:[%s1543 + $0x30] sm:$0xff] %vm1071, %v1492
      %1551 = vst.msk [vmem:[%s1543 + $0x38] sm:$0xff] %vm1071, %v1494
      %1552 = vst.msk [vmem:[%s1543 + $0x40] sm:$0xff] %vm1071, %v1496
      %1553 = vst.msk [vmem:[%s1543 + $0x48] sm:$0xff] %vm1071, %v1498
      %1554 = vst.msk [vmem:[%s1543 + $0x50] sm:$0xff] %vm1071, %v1500
      %1555 = vst.msk [vmem:[%s1543 + $0x58] sm:$0xff] %vm1071, %v1502
      %1556 = vst.msk [vmem:[%s1543 + $0x60] sm:$0xff] %vm1071, %v1504
      %1557 = vst.msk [vmem:[%s1543 + $0x68] sm:$0xff] %vm1071, %v1506
      %1558 = vst.msk [vmem:[%s1543 + $0x70] sm:$0xff] %vm1071, %v1508
      %1559 = vst.msk [vmem:[%s1543 + $0x78] sm:$0xff] %vm1071, %v1510
      %1560 = vst.msk [vmem:[%s1543 + $0x80] sm:$0xff] %vm1071, %v1512
      %1561 = vst.msk [vmem:[%s1543 + $0x88] sm:$0xff] %vm1071, %v1514
      %1562 = vst.msk [vmem:[%s1543 + $0x90] sm:$0xff] %vm1071, %v1516
      %1563 = vst.msk [vmem:[%s1543 + $0x98] sm:$0xff] %vm1071, %v1518
      %1564 = vst.msk [vmem:[%s1543 + $0xa0] sm:$0xff] %vm1071, %v1520
      %1565 = vst.msk [vmem:[%s1543 + $0xa8] sm:$0xff] %vm1071, %v1522
      %1566 = vst.msk [vmem:[%s1543 + $0xb0] sm:$0xff] %vm1071, %v1524
      %1567 = vst.msk [vmem:[%s1543 + $0xb8] sm:$0xff] %vm1071, %v1526
      %1568 = vst.msk [vmem:[%s1543 + $0xc0] sm:$0xff] %vm1071, %v1528
      %1569 = vst.msk [vmem:[%s1543 + $0xc8] sm:$0xff] %vm1071, %v1530
      %1570 = vst.msk [vmem:[%s1543 + $0xd0] sm:$0xff] %vm1071, %v1532
      %1571 = vst.msk [vmem:[%s1543 + $0xd8] sm:$0xff] %vm1071, %v1534
      %1572 = vst.msk [vmem:[%s1543 + $0xe0] sm:$0xff] %vm1071, %v1536
      %1573 = vst.msk [vmem:[%s1543 + $0xe8] sm:$0xff] %vm1071, %v1538
      %1574 = vst.msk [vmem:[%s1543 + $0xf0] sm:$0xff] %vm1071, %v1540
      %1575 = vst.msk [vmem:[%s1543 + $0xf8] sm:$0xff] %vm1071, %v1542
      %s1576 = smul.u32 2, %s16
      %p1577 = scmp.lt.s32.totalorder %s1576, 5
      %s1578 = scalar_select %p1577, %s1576, 5
      %s1579 = smul.addr %s1578, 32
      %s1580 = smul.addr %s1579, 8
      %s1581 = scalar_lea.vmem %s5, %s1580
      // Predicated region
      $region41: #{tpu_custom_call.1} parent=39 // pred_check
        %p1582 = pneg %p144
      $region42: #{tpu_custom_call.1} parent=39 // pred_check_branch
        %1584 = sbr.rel (%p1582) target = $region44
      $region43: #{tpu_custom_call.1} parent=39 // pred_region
        %s1585 = smul.u32 2, %s16
      $region44: #{tpu_custom_call.1} parent=39 // pred_fallthru
        _
    $region40: #{tpu_custom_call.1} parent=5 // pred_fallthru
      _
    %p1586 = scmp.le.s32.totalorder 2, %s11
    // Predicated region
    $region45: #{tpu_custom_call.1} parent=5 // pred_check
      %p1587 = pneg %p1586
    $region46: #{tpu_custom_call.1} parent=5 // pred_check_branch
      %1589 = sbr.rel (%p1587) target = $region48
    $region47: #{tpu_custom_call.1} parent=5 // pred_region
      %s1590 = ssub.s32 %s11, 2
      // Predicated region
      $region49: #{tpu_custom_call.1} parent=47 // pred_check
        %p1591 = pneg %p150
      $region50: #{tpu_custom_call.1} parent=47 // pred_check_branch
        %1593 = sbr.rel (%p1591) target = $region52
      $region51: #{tpu_custom_call.1} parent=47 // pred_region
        %s1594 = smul.u32 2, %s17
        %p1595 = scmp.lt.s32.totalorder %s1594, 5
        %s1596 = scalar_select %p1595, %s1594, 5
        %s1597 = smul.addr %s1596, 32
        %s1598 = smul.addr %s1597, 8
        %s1599 = scalar_lea.vmem %s5, %s1598
      $region52: #{tpu_custom_call.1} parent=47 // pred_fallthru
        _
    $region48: #{tpu_custom_call.1} parent=5 // pred_fallthru
      _
  $region6: #{tpu_custom_call.1} parent=0 // loop_footer
    %s15 = sadd.s32 1, %s11
  $region7: #{tpu_custom_call.1} parent=0 // loop_footer_branch
    %10 = sbr.rel target = $region3
  $region8: #{tpu_custom_call.1} parent=0 // loop_exit
    _

</llo_original>
